<compile_context>
chip_gen: v6e
topology: v6e:2x2x1
jax: 0.10.0
libtpu: 0.0.40
codegen_flags: <defaults>
</compile_context>

<pallas_src>
import functools

import jax
import jax.numpy as jnp
import numpy as np
from jax.experimental import pallas as pl
from jax.experimental.pallas import tpu as pltpu


def _layernorm(x, gamma, beta, eps=1e-6):
    mu = jnp.mean(x, axis=-1, keepdims=True)
    var = jnp.mean((x - mu) ** 2, axis=-1, keepdims=True)
    return (x - mu) * jax.lax.rsqrt(var + eps) * gamma + beta


def encoder_layer_kernel(
    # inputs
    x_ref,
    ln1_g_ref, ln1_b_ref,
    wqkv_ref, bqkv_ref,
    wo_ref, bo_ref,
    ln2_g_ref, ln2_b_ref,
    w1_ref, b1_ref, w2_ref, b2_ref,
    # outputs
    out_ref, kproj_ref, vproj_ref,
    # scratch
    qh_scr, kh_scr, vh_scr, am_scr, out1_scr, n2_scr, ffn_acc,
    *, num_heads, batch_tile, head_chunk,
):
    kf = pl.program_id(1)                 # dff-tile index (reduction axis)
    R, D = out1_scr.shape                 # R = Bt * S flattened activation rows
    Bt = batch_tile
    S = R // Bt
    H = num_heads
    dh = D // H
    G = Bt * H                            # (batch-row, head) groups
    Gc = head_chunk
    num_chunks = G // Gc

    # ---------- phase 1 (kf == 0): LN1 + attention + residual + LN2 ----------
    @pl.when(kf == 0)
    def _attention():
        x = x_ref[...]                                            # [R, D] f32
        normed = _layernorm(x, ln1_g_ref[...], ln1_b_ref[...])
        nb = normed.astype(jnp.bfloat16)

        # fused QKV projection (Q columns pre-scaled by 1/sqrt(dh) host-side):
        # one [R, D] x [D, 3D] MXU pass with f32 accumulation.
        qkv = jnp.dot(nb, wqkv_ref[...],
                      preferred_element_type=jnp.float32) + bqkv_ref[...]
        q = qkv[:, 0:D]
        k = qkv[:, D:2 * D]
        v = qkv[:, 2 * D:3 * D]

        # export K/V projections (lane-dense [R, D] f32) for the "present" cache.
        # NOTE: relies on the output block index being constant across kf so the
        # block stays VMEM-resident until the last kf step.
        kproj_ref[...] = k
        vproj_ref[...] = v

        # head split into (batch-row, head)-major bf16 scratch
        for b in range(Bt):
            rs = slice(b * S, (b + 1) * S)
            for h in range(H):
                cs = slice(h * dh, (h + 1) * dh)
                g = b * H + h
                qh_scr[g] = q[rs, cs].astype(jnp.bfloat16)
                kh_scr[g] = k[rs, cs].astype(jnp.bfloat16)
                vh_scr[g] = v[rs, cs].astype(jnp.bfloat16)

        # causal CTRL mask (triu(k=1) * -10000) generated in-kernel, hoisted
        # out of the head-chunk loop (no [S, S] HBM input).
        row = jax.lax.broadcasted_iota(jnp.int32, (S, S), 0)
        col = jax.lax.broadcasted_iota(jnp.int32, (S, S), 1)
        neg = jnp.where(col > row, -10000.0, 0.0).astype(jnp.float32)

        # head-chunked attention: only [Gc, S, S] softmax temporaries live at
        # once (f32 softmax is kept for v5e portability / numerical parity).
        def chunk_body(c, carry):
            g0 = c * Gc
            qc = qh_scr[pl.ds(g0, Gc)]                            # [Gc, S, dh] bf16
            kc = kh_scr[pl.ds(g0, Gc)]
            vc = vh_scr[pl.ds(g0, Gc)]
            logits = jnp.einsum("gqd,gkd->gqk", qc, kc,
                                preferred_element_type=jnp.float32) + neg
            logits = logits - jnp.max(logits, axis=-1, keepdims=True)
            p = jnp.exp(logits)
            p = p * pl.reciprocal(jnp.sum(p, axis=-1, keepdims=True), approx=True)
            attn = jnp.einsum("gqk,gkd->gqd", p.astype(jnp.bfloat16), vc,
                              preferred_element_type=jnp.float32)
            # q scratch is no longer needed for this chunk -> reuse it for the
            # attention output (saves one [G, S, dh] VMEM buffer).
            qh_scr[pl.ds(g0, Gc)] = attn.astype(jnp.bfloat16)
            return carry

        if num_chunks == 1:
            chunk_body(0, 0)
        else:
            jax.lax.fori_loop(0, num_chunks, chunk_body, 0)

        # merge heads into a lane-dense [R, D] scratch, then one wide Wo matmul
        # (contraction size D keeps MXU utilization high).
        for b in range(Bt):
            rs = slice(b * S, (b + 1) * S)
            for h in range(H):
                am_scr[rs, h * dh:(h + 1) * dh] = qh_scr[b * H + h]
        attn_out = jnp.dot(am_scr[...], wo_ref[...],
                           preferred_element_type=jnp.float32) + bo_ref[...]

        out1 = x + attn_out                     # dropout1 is identity in eval mode
        out1_scr[...] = out1
        n2_scr[...] = _layernorm(out1, ln2_g_ref[...],
                                 ln2_b_ref[...]).astype(jnp.bfloat16)
        ffn_acc[...] = jnp.zeros_like(ffn_acc)

    # ---------- phase 2 (every kf): one dff tile of the FFN ----------
    # M = Bt*S rows, so each streamed W1/W2 tile is reused across Bt sequences.
    h1 = jnp.dot(n2_scr[...], w1_ref[...],
                 preferred_element_type=jnp.float32) + b1_ref[...]
    h1 = jnp.maximum(h1, 0.0)
    ffn_acc[...] += jnp.dot(h1.astype(jnp.bfloat16), w2_ref[...],
                            preferred_element_type=jnp.float32)

    # ---------- finalize on last dff tile ----------
    @pl.when(kf == pl.num_programs(1) - 1)
    def _finalize():
        out_ref[...] = out1_scr[...] + ffn_acc[...] + b2_ref[...]  # dropout2 identity


def _pick_batch_tile(batch, seq, max_rows=256):
    """Largest batch tile whose activation rows stay modest and sublane-clean."""
    cap = max(seq, max_rows)
    valid = [c for c in range(1, batch + 1)
             if batch % c == 0 and (c == batch or (c * seq) % 8 == 0)]
    under = [c for c in valid if c * seq <= cap]
    return max(under) if under else min(valid)


def _pick_head_chunk(groups, seq, budget_bytes=2 * 1024 * 1024):
    """Largest (batch-row, head) chunk whose [Gc, S, S] f32 logits fit a budget."""
    cap = max(seq * seq * 4, budget_bytes)
    best = 1
    for cand in range(1, groups + 1):
        if groups % cand == 0 and cand * seq * seq * 4 <= cap:
            best = cand
    return best


def _default_vmem_limit():
    # v7x has only 64 MiB of VMEM per TensorCore -> leave headroom for the
    # compiler's scratch and double buffers; v5e/v6e have 128 MiB.
    try:
        cap = pltpu.get_tpu_info().vmem_capacity_bytes
    except Exception:                       # older jax / attribute rename
        cap = 64 * 1024 * 1024
    return min(int(cap * 3 // 4), 96 * 1024 * 1024)


def encoder_layer(x, params, num_heads, tdff=None, batch_tile=None, head_chunk=None):
    B, S, D = x.shape
    dff = params["w1"].shape[1]
    assert D % num_heads == 0
    dh = D // num_heads
    scale = 1.0 / np.sqrt(dh)

    if tdff is None:                        # v7x-friendly default; tune per chip
        if dff <= 512:
            tdff = dff
        else:
            cands = [t for t in range(128, 513, 128) if dff % t == 0]
            tdff = max(cands) if cands else dff
    assert dff % tdff == 0
    kf_steps = dff // tdff

    if batch_tile is None:
        batch_tile = _pick_batch_tile(B, S)
    Bt = batch_tile
    assert B % Bt == 0
    R = Bt * S
    assert R % 8 == 0 or Bt == B

    G = Bt * num_heads
    if head_chunk is None:
        head_chunk = _pick_head_chunk(G, S)
    assert G % head_chunk == 0

    bf = lambda w: jnp.asarray(w, jnp.bfloat16)
    f32 = lambda w: jnp.asarray(w, jnp.float32)

    # fused QKV weights; the 1/sqrt(dh) attention scale folds into the Q columns
    wqkv = jnp.concatenate(
        [f32(params["wq"]) * scale, f32(params["wk"]), f32(params["wv"])],
        axis=1).astype(jnp.bfloat16)
    bqkv = jnp.concatenate(
        [f32(params["bq"]) * scale, f32(params["bk"]), f32(params["bv"])], axis=1)

    # constant-across-grid blocks and write-once outputs: single-buffered
    const = lambda shape: pl.BlockSpec(shape, lambda b, k: (0, 0),
                                       pipeline_mode=pl.Buffered(1))
    act_in = pl.BlockSpec((R, D), lambda b, k: (b, 0))
    act_out = pl.BlockSpec((R, D), lambda b, k: (b, 0),
                           pipeline_mode=pl.Buffered(1))

    in_specs = [
        act_in,                                         # x (flattened to [B*S, D])
        const((1, D)), const((1, D)),                   # ln1 gamma, beta
        const((D, 3 * D)), const((1, 3 * D)),           # fused Wqkv, bqkv
        const((D, D)), const((1, D)),                   # Wo, bo
        const((1, D)), const((1, D)),                   # ln2 gamma, beta
        pl.BlockSpec((D, tdff), lambda b, k: (0, k)),   # W1 tile
        pl.BlockSpec((1, tdff), lambda b, k: (0, k)),   # b1 tile
        pl.BlockSpec((tdff, D), lambda b, k: (k, 0)),   # W2 tile
        const((1, D)),                                  # b2
    ]
    out_specs = [act_out, act_out, act_out]
    out_shapes = [jax.ShapeDtypeStruct((B * S, D), jnp.float32)] * 3

    kernel = functools.partial(encoder_layer_kernel, num_heads=num_heads,
                               batch_tile=Bt, head_chunk=head_chunk)
    out2, kproj, vproj = pl.pallas_call(
        kernel,
        out_shape=out_shapes,
        grid_spec=pltpu.PrefetchScalarGridSpec(
            num_scalar_prefetch=0,
            grid=(B // Bt, kf_steps),
            in_specs=in_specs,
            out_specs=out_specs,
            scratch_shapes=[
                pltpu.VMEM((G, S, dh), jnp.bfloat16),   # q heads (then attn out)
                pltpu.VMEM((G, S, dh), jnp.bfloat16),   # k heads
                pltpu.VMEM((G, S, dh), jnp.bfloat16),   # v heads
                pltpu.VMEM((R, D), jnp.bfloat16),       # merged attention heads
                pltpu.VMEM((R, D), jnp.float32),        # out1 (attn residual)
                pltpu.VMEM((R, D), jnp.bfloat16),       # LN2 output (FFN input)
                pltpu.VMEM((R, D), jnp.float32),        # FFN accumulator
            ],
        ),
        compiler_params=pltpu.CompilerParams(
            dimension_semantics=("parallel", "arbitrary"),
            vmem_limit_bytes=_default_vmem_limit(),
        ),
    )(
        f32(x).reshape(B * S, D),
        f32(params["ln1_g"]), f32(params["ln1_b"]),
        wqkv, bqkv,
        bf(params["wo"]), f32(params["bo"]),
        f32(params["ln2_g"]), f32(params["ln2_b"]),
        bf(params["w1"]), f32(params["b1"]),
        bf(params["w2"]), f32(params["b2"]),
    )

    # present = stack(k_heads, v_heads): [2, B, H, S, depth] (pure reshape glue)
    split = lambda t: t.reshape(B, S, num_heads, dh).transpose(0, 2, 1, 3)
    present = jnp.stack([split(kproj), split(vproj)])
    return out2.reshape(B, S, D), present


def encoder_layer_ref(x, params, num_heads):
    """Pure-JAX f32 reference mirroring the PyTorch forward (eval mode)."""
    B, S, D = x.shape
    dh = D // num_heads
    mask = jnp.triu(jnp.ones((S, S), jnp.float32), k=1)

    normed = _layernorm(x, params["ln1_g"], params["ln1_b"])
    q = normed @ params["wq"] + params["bq"]
    k = normed @ params["wk"] + params["bk"]
    v = normed @ params["wv"] + params["bv"]
    split = lambda t: t.reshape(B, S, num_heads, dh).transpose(0, 2, 1, 3)
    qh, kh, vh = split(q), split(k), split(v)
    logits = jnp.einsum("bhqd,bhkd->bhqk", qh, kh) / np.sqrt(dh)
    logits = logits + mask * (-10000.0)
    w = jax.nn.softmax(logits, axis=-1)
    attn = jnp.einsum("bhqk,bhkd->bhqd", w, vh)
    attn = attn.transpose(0, 2, 1, 3).reshape(B, S, D)
    attn_out = attn @ params["wo"] + params["bo"]
    out1 = x + attn_out
    normed2 = _layernorm(out1, params["ln2_g"], params["ln2_b"])
    h1 = jnp.maximum(normed2 @ params["w1"] + params["b1"], 0.0)
    ffn = h1 @ params["w2"] + params["b2"]
    present = jnp.stack([split(k), split(v)])
    return out1 + ffn, present


def make_params(key, d_model, dff):
    ks = jax.random.split(key, 12)
    n = lambda k, shape, s=0.05: (s * jax.random.normal(k, shape)).astype(jnp.float32)
    return {
        "ln1_g": jnp.ones((1, d_model), jnp.float32),
        "ln1_b": jnp.zeros((1, d_model), jnp.float32),
        "wq": n(ks[0], (d_model, d_model)), "bq": n(ks[1], (1, d_model)),
        "wk": n(ks[2], (d_model, d_model)), "bk": n(ks[3], (1, d_model)),
        "wv": n(ks[4], (d_model, d_model)), "bv": n(ks[5], (1, d_model)),
        "wo": n(ks[6], (d_model, d_model)), "bo": n(ks[7], (1, d_model)),
        "ln2_g": jnp.ones((1, d_model), jnp.float32),
        "ln2_b": jnp.zeros((1, d_model), jnp.float32),
        "w1": n(ks[8], (d_model, dff)), "b1": n(ks[9], (1, dff)),
        "w2": n(ks[10], (dff, d_model)), "b2": n(ks[11], (1, d_model)),
    }


if __name__ == "__main__":
    # small shapes; dff=256 with tdff=128 exercises the 2-step FFN reduction axis
    B, S, D, H, DFF = 2, 8, 32, 4, 256

    key = jax.random.PRNGKey(0)
    kx, kp = jax.random.split(key)
    x = jax.random.normal(kx, (B, S, D), dtype=jnp.float32)
    params = make_params(kp, D, DFF)

    ref_out, ref_present = encoder_layer_ref(x, params, num_heads=H)

    # config 1: whole batch per grid step (Bt=2), head_chunk=4 -> 2 head chunks
    out, present = encoder_layer(x, params, num_heads=H, tdff=128, head_chunk=4)
    out = jax.block_until_ready(out)
    present = jax.block_until_ready(present)
    np.testing.assert_allclose(np.asarray(out), np.asarray(ref_out),
                               rtol=2e-2, atol=2e-2)
    np.testing.assert_allclose(np.asarray(present), np.asarray(ref_present),
                               rtol=2e-2, atol=2e-2)
    assert present.shape == (2, B, H, S, D // H)

    # config 2: per-sequence batch tiles exercise the batch grid axis + chunk loop
    out2, present2 = encoder_layer(x, params, num_heads=H, tdff=128,
                                   batch_tile=1, head_chunk=2)
    out2 = jax.block_until_ready(out2)
    present2 = jax.block_until_ready(present2)
    np.testing.assert_allclose(np.asarray(out2), np.asarray(ref_out),
                               rtol=2e-2, atol=2e-2)
    np.testing.assert_allclose(np.asarray(present2), np.asarray(ref_present),
                               rtol=2e-2, atol=2e-2)

    print("KERNEL_OK")
</pallas_src>

<mosaic_0001>
module attributes {stable_mosaic.version = 11 : i64} {
  func.func @encoder_layer_kernel(%arg0: i32, %arg1: i32, %arg2: memref<16x32xf32, #tpu.memory_space<vmem>>, %arg3: memref<1x32xf32, #tpu.memory_space<vmem>>, %arg4: memref<1x32xf32, #tpu.memory_space<vmem>>, %arg5: memref<32x96xbf16, #tpu.memory_space<vmem>>, %arg6: memref<1x96xf32, #tpu.memory_space<vmem>>, %arg7: memref<32x32xbf16, #tpu.memory_space<vmem>>, %arg8: memref<1x32xf32, #tpu.memory_space<vmem>>, %arg9: memref<1x32xf32, #tpu.memory_space<vmem>>, %arg10: memref<1x32xf32, #tpu.memory_space<vmem>>, %arg11: memref<32x128xbf16, #tpu.memory_space<vmem>>, %arg12: memref<1x128xf32, #tpu.memory_space<vmem>>, %arg13: memref<128x32xbf16, #tpu.memory_space<vmem>>, %arg14: memref<1x32xf32, #tpu.memory_space<vmem>>, %arg15: memref<16x32xf32, #tpu.memory_space<vmem>>, %arg16: memref<16x32xf32, #tpu.memory_space<vmem>>, %arg17: memref<16x32xf32, #tpu.memory_space<vmem>>, %arg18: memref<8x8x8xbf16, #tpu.memory_space<vmem>>, %arg19: memref<8x8x8xbf16, #tpu.memory_space<vmem>>, %arg20: memref<8x8x8xbf16, #tpu.memory_space<vmem>>, %arg21: memref<16x32xbf16, #tpu.memory_space<vmem>>, %arg22: memref<16x32xf32, #tpu.memory_space<vmem>>, %arg23: memref<16x32xbf16, #tpu.memory_space<vmem>>, %arg24: memref<16x32xf32, #tpu.memory_space<vmem>>) attributes {dimension_semantics = [#tpu.dimension_semantics<parallel>, #tpu.dimension_semantics<arbitrary>], iteration_bounds = array<i64: 1, 2>, scalar_prefetch = 0 : i64, scratch_operands = 7 : i64, tpu.core_type = #tpu.core_type<tc>, window_params = [{transform_indices = @transform_0, window_bounds = array<i64: 16, 32>}, {pipeline_mode = #tpu.pipeline_mode<synchronous>, transform_indices = @transform_1, window_bounds = array<i64: 1, 32>}, {pipeline_mode = #tpu.pipeline_mode<synchronous>, transform_indices = @transform_2, window_bounds = array<i64: 1, 32>}, {pipeline_mode = #tpu.pipeline_mode<synchronous>, transform_indices = @transform_3, window_bounds = array<i64: 32, 96>}, {pipeline_mode = #tpu.pipeline_mode<synchronous>, transform_indices = @transform_4, window_bounds = array<i64: 1, 96>}, {pipeline_mode = #tpu.pipeline_mode<synchronous>, transform_indices = @transform_5, window_bounds = array<i64: 32, 32>}, {pipeline_mode = #tpu.pipeline_mode<synchronous>, transform_indices = @transform_6, window_bounds = array<i64: 1, 32>}, {pipeline_mode = #tpu.pipeline_mode<synchronous>, transform_indices = @transform_7, window_bounds = array<i64: 1, 32>}, {pipeline_mode = #tpu.pipeline_mode<synchronous>, transform_indices = @transform_8, window_bounds = array<i64: 1, 32>}, {transform_indices = @transform_9, window_bounds = array<i64: 32, 128>}, {transform_indices = @transform_10, window_bounds = array<i64: 1, 128>}, {transform_indices = @transform_11, window_bounds = array<i64: 128, 32>}, {pipeline_mode = #tpu.pipeline_mode<synchronous>, transform_indices = @transform_12, window_bounds = array<i64: 1, 32>}, {pipeline_mode = #tpu.pipeline_mode<synchronous>, transform_indices = @transform_13, window_bounds = array<i64: 16, 32>}, {pipeline_mode = #tpu.pipeline_mode<synchronous>, transform_indices = @transform_14, window_bounds = array<i64: 16, 32>}, {pipeline_mode = #tpu.pipeline_mode<synchronous>, transform_indices = @transform_15, window_bounds = array<i64: 16, 32>}]} {
    %c0_i32 = arith.constant 0 : i32
    %0 = arith.cmpi eq, %arg1, %c0_i32 : i32
    %1 = arith.extui %0 : i1 to i32
    %c0_i32_0 = arith.constant 0 : i32
    %2 = arith.cmpi ne, %1, %c0_i32_0 : i32
    scf.if %2 {
      %c0_15 = arith.constant 0 : index
      %c0_16 = arith.constant 0 : index
      %20 = vector.load %arg2[%c0_15, %c0_16] : memref<16x32xf32, #tpu.memory_space<vmem>>, vector<16x32xf32>
      %c0_17 = arith.constant 0 : index
      %c0_18 = arith.constant 0 : index
      %21 = vector.load %arg3[%c0_17, %c0_18] : memref<1x32xf32, #tpu.memory_space<vmem>>, vector<1x32xf32>
      %c0_19 = arith.constant 0 : index
      %c0_20 = arith.constant 0 : index
      %22 = vector.load %arg4[%c0_19, %c0_20] : memref<1x32xf32, #tpu.memory_space<vmem>>, vector<1x32xf32>
      %cst_21 = arith.constant dense<0.000000e+00> : vector<16xf32>
      %23 = vector.multi_reduction <add>, %20, %cst_21 [1] : vector<16x32xf32> to vector<16xf32>
      %24 = vector.shape_cast %23 : vector<16xf32> to vector<16x1xf32>
      %cst_22 = arith.constant 3.200000e+01 : f32
      %25 = vector.broadcast %cst_22 : f32 to vector<16x1xf32>
      %26 = arith.divf %24, %25 : vector<16x1xf32>
      %27 = vector.broadcast %26 : vector<16x1xf32> to vector<16x32xf32>
      %28 = arith.subf %20, %27 : vector<16x32xf32>
      %29 = arith.mulf %28, %28 : vector<16x32xf32>
      %cst_23 = arith.constant dense<0.000000e+00> : vector<16xf32>
      %30 = vector.multi_reduction <add>, %29, %cst_23 [1] : vector<16x32xf32> to vector<16xf32>
      %31 = vector.shape_cast %30 : vector<16xf32> to vector<16x1xf32>
      %cst_24 = arith.constant 3.200000e+01 : f32
      %32 = vector.broadcast %cst_24 : f32 to vector<16x1xf32>
      %33 = arith.divf %31, %32 : vector<16x1xf32>
      %34 = vector.broadcast %26 : vector<16x1xf32> to vector<16x32xf32>
      %35 = arith.subf %20, %34 : vector<16x32xf32>
      %cst_25 = arith.constant 9.99999997E-7 : f32
      %36 = vector.broadcast %cst_25 : f32 to vector<16x1xf32>
      %37 = arith.addf %33, %36 : vector<16x1xf32>
      %38 = math.rsqrt %37 : vector<16x1xf32>
      %39 = vector.broadcast %38 : vector<16x1xf32> to vector<16x32xf32>
      %40 = arith.mulf %35, %39 : vector<16x32xf32>
      %41 = vector.broadcast %21 : vector<1x32xf32> to vector<16x32xf32>
      %42 = arith.mulf %40, %41 : vector<16x32xf32>
      %43 = vector.broadcast %22 : vector<1x32xf32> to vector<16x32xf32>
      %44 = arith.addf %42, %43 : vector<16x32xf32>
      %45 = arith.truncf %44 : vector<16x32xf32> to vector<16x32xbf16>
      %c0_26 = arith.constant 0 : index
      %c0_27 = arith.constant 0 : index
      %46 = vector.load %arg5[%c0_26, %c0_27] : memref<32x96xbf16, #tpu.memory_space<vmem>>, vector<32x96xbf16>
      %cst_28 = arith.constant dense<0.000000e+00> : vector<16x96xf32>
      %47 = tpu.matmul %45, %46, %cst_28 {dimension_numbers = #tpu.dot_dimension_numbers<[1], [0], [0], [1], [0, 0, 1, 1], [], []>} : vector<16x32xbf16>, vector<32x96xbf16>, vector<16x96xf32> -> vector<16x96xf32>
      %c0_29 = arith.constant 0 : index
      %c0_30 = arith.constant 0 : index
      %48 = vector.load %arg6[%c0_29, %c0_30] : memref<1x96xf32, #tpu.memory_space<vmem>>, vector<1x96xf32>
      %49 = vector.broadcast %48 : vector<1x96xf32> to vector<16x96xf32>
      %50 = arith.addf %47, %49 : vector<16x96xf32>
      %51 = vector.extract_strided_slice %50 {offsets = [0, 0], sizes = [16, 32], strides = [1, 1]} : vector<16x96xf32> to vector<16x32xf32>
      %52 = vector.extract_strided_slice %50 {offsets = [0, 32], sizes = [16, 32], strides = [1, 1]} : vector<16x96xf32> to vector<16x32xf32>
      %53 = vector.extract_strided_slice %50 {offsets = [0, 64], sizes = [16, 32], strides = [1, 1]} : vector<16x96xf32> to vector<16x32xf32>
      %c0_31 = arith.constant 0 : index
      %c0_32 = arith.constant 0 : index
      %54 = vector.load %arg16[%c0_31, %c0_32] : memref<16x32xf32, #tpu.memory_space<vmem>>, vector<16x32xf32>
      tpu.vector_store %arg16[%c0_31, %c0_32], %52 {strides = array<i32>} : memref<16x32xf32, #tpu.memory_space<vmem>>, vector<16x32xf32>,
      %c0_33 = arith.constant 0 : index
      %c0_34 = arith.constant 0 : index
      %55 = vector.load %arg17[%c0_33, %c0_34] : memref<16x32xf32, #tpu.memory_space<vmem>>, vector<16x32xf32>
      tpu.vector_store %arg17[%c0_33, %c0_34], %53 {strides = array<i32>} : memref<16x32xf32, #tpu.memory_space<vmem>>, vector<16x32xf32>,
      %56 = vector.extract_strided_slice %51 {offsets = [0, 0], sizes = [8, 8], strides = [1, 1]} : vector<16x32xf32> to vector<8x8xf32>
      %57 = arith.truncf %56 : vector<8x8xf32> to vector<8x8xbf16>
      %c0_35 = arith.constant 0 : index
      %c0_36 = arith.constant 0 : index
      %c0_37 = arith.constant 0 : index
      %58 = vector.load %arg18[%c0_35, %c0_36, %c0_37] : memref<8x8x8xbf16, #tpu.memory_space<vmem>>, vector<1x8x8xbf16>
      %59 = vector.shape_cast %58 : vector<1x8x8xbf16> to vector<8x8xbf16>
      %60 = vector.shape_cast %57 : vector<8x8xbf16> to vector<1x8x8xbf16>
      tpu.vector_store %arg18[%c0_35, %c0_36, %c0_37], %60 {strides = array<i32>} : memref<8x8x8xbf16, #tpu.memory_space<vmem>>, vector<1x8x8xbf16>,
      %61 = vector.extract_strided_slice %52 {offsets = [0, 0], sizes = [8, 8], strides = [1, 1]} : vector<16x32xf32> to vector<8x8xf32>
      %62 = arith.truncf %61 : vector<8x8xf32> to vector<8x8xbf16>
      %c0_38 = arith.constant 0 : index
      %c0_39 = arith.constant 0 : index
      %c0_40 = arith.constant 0 : index
      %63 = vector.load %arg19[%c0_38, %c0_39, %c0_40] : memref<8x8x8xbf16, #tpu.memory_space<vmem>>, vector<1x8x8xbf16>
      %64 = vector.shape_cast %63 : vector<1x8x8xbf16> to vector<8x8xbf16>
      %65 = vector.shape_cast %62 : vector<8x8xbf16> to vector<1x8x8xbf16>
      tpu.vector_store %arg19[%c0_38, %c0_39, %c0_40], %65 {strides = array<i32>} : memref<8x8x8xbf16, #tpu.memory_space<vmem>>, vector<1x8x8xbf16>,
      %66 = vector.extract_strided_slice %53 {offsets = [0, 0], sizes = [8, 8], strides = [1, 1]} : vector<16x32xf32> to vector<8x8xf32>
      %67 = arith.truncf %66 : vector<8x8xf32> to vector<8x8xbf16>
      %c0_41 = arith.constant 0 : index
      %c0_42 = arith.constant 0 : index
      %c0_43 = arith.constant 0 : index
      %68 = vector.load %arg20[%c0_41, %c0_42, %c0_43] : memref<8x8x8xbf16, #tpu.memory_space<vmem>>, vector<1x8x8xbf16>
      %69 = vector.shape_cast %68 : vector<1x8x8xbf16> to vector<8x8xbf16>
      %70 = vector.shape_cast %67 : vector<8x8xbf16> to vector<1x8x8xbf16>
      tpu.vector_store %arg20[%c0_41, %c0_42, %c0_43], %70 {strides = array<i32>} : memref<8x8x8xbf16, #tpu.memory_space<vmem>>, vector<1x8x8xbf16>,
      %71 = vector.extract_strided_slice %51 {offsets = [0, 8], sizes = [8, 8], strides = [1, 1]} : vector<16x32xf32> to vector<8x8xf32>
      %72 = arith.truncf %71 : vector<8x8xf32> to vector<8x8xbf16>
      %c1 = arith.constant 1 : index
      %c0_44 = arith.constant 0 : index
      %c0_45 = arith.constant 0 : index
      %73 = vector.load %arg18[%c1, %c0_44, %c0_45] : memref<8x8x8xbf16, #tpu.memory_space<vmem>>, vector<1x8x8xbf16>
      %74 = vector.shape_cast %73 : vector<1x8x8xbf16> to vector<8x8xbf16>
      %75 = vector.shape_cast %72 : vector<8x8xbf16> to vector<1x8x8xbf16>
      tpu.vector_store %arg18[%c1, %c0_44, %c0_45], %75 {strides = array<i32>} : memref<8x8x8xbf16, #tpu.memory_space<vmem>>, vector<1x8x8xbf16>,
      %76 = vector.extract_strided_slice %52 {offsets = [0, 8], sizes = [8, 8], strides = [1, 1]} : vector<16x32xf32> to vector<8x8xf32>
      %77 = arith.truncf %76 : vector<8x8xf32> to vector<8x8xbf16>
      %c1_46 = arith.constant 1 : index
      %c0_47 = arith.constant 0 : index
      %c0_48 = arith.constant 0 : index
      %78 = vector.load %arg19[%c1_46, %c0_47, %c0_48] : memref<8x8x8xbf16, #tpu.memory_space<vmem>>, vector<1x8x8xbf16>
      %79 = vector.shape_cast %78 : vector<1x8x8xbf16> to vector<8x8xbf16>
      %80 = vector.shape_cast %77 : vector<8x8xbf16> to vector<1x8x8xbf16>
      tpu.vector_store %arg19[%c1_46, %c0_47, %c0_48], %80 {strides = array<i32>} : memref<8x8x8xbf16, #tpu.memory_space<vmem>>, vector<1x8x8xbf16>,
      %81 = vector.extract_strided_slice %53 {offsets = [0, 8], sizes = [8, 8], strides = [1, 1]} : vector<16x32xf32> to vector<8x8xf32>
      %82 = arith.truncf %81 : vector<8x8xf32> to vector<8x8xbf16>
      %c1_49 = arith.constant 1 : index
      %c0_50 = arith.constant 0 : index
      %c0_51 = arith.constant 0 : index
      %83 = vector.load %arg20[%c1_49, %c0_50, %c0_51] : memref<8x8x8xbf16, #tpu.memory_space<vmem>>, vector<1x8x8xbf16>
      %84 = vector.shape_cast %83 : vector<1x8x8xbf16> to vector<8x8xbf16>
      %85 = vector.shape_cast %82 : vector<8x8xbf16> to vector<1x8x8xbf16>
      tpu.vector_store %arg20[%c1_49, %c0_50, %c0_51], %85 {strides = array<i32>} : memref<8x8x8xbf16, #tpu.memory_space<vmem>>, vector<1x8x8xbf16>,
      %86 = vector.extract_strided_slice %51 {offsets = [0, 16], sizes = [8, 8], strides = [1, 1]} : vector<16x32xf32> to vector<8x8xf32>
      %87 = arith.truncf %86 : vector<8x8xf32> to vector<8x8xbf16>
      %c2 = arith.constant 2 : index
      %c0_52 = arith.constant 0 : index
      %c0_53 = arith.constant 0 : index
      %88 = vector.load %arg18[%c2, %c0_52, %c0_53] : memref<8x8x8xbf16, #tpu.memory_space<vmem>>, vector<1x8x8xbf16>
      %89 = vector.shape_cast %88 : vector<1x8x8xbf16> to vector<8x8xbf16>
      %90 = vector.shape_cast %87 : vector<8x8xbf16> to vector<1x8x8xbf16>
      tpu.vector_store %arg18[%c2, %c0_52, %c0_53], %90 {strides = array<i32>} : memref<8x8x8xbf16, #tpu.memory_space<vmem>>, vector<1x8x8xbf16>,
      %91 = vector.extract_strided_slice %52 {offsets = [0, 16], sizes = [8, 8], strides = [1, 1]} : vector<16x32xf32> to vector<8x8xf32>
      %92 = arith.truncf %91 : vector<8x8xf32> to vector<8x8xbf16>
      %c2_54 = arith.constant 2 : index
      %c0_55 = arith.constant 0 : index
      %c0_56 = arith.constant 0 : index
      %93 = vector.load %arg19[%c2_54, %c0_55, %c0_56] : memref<8x8x8xbf16, #tpu.memory_space<vmem>>, vector<1x8x8xbf16>
      %94 = vector.shape_cast %93 : vector<1x8x8xbf16> to vector<8x8xbf16>
      %95 = vector.shape_cast %92 : vector<8x8xbf16> to vector<1x8x8xbf16>
      tpu.vector_store %arg19[%c2_54, %c0_55, %c0_56], %95 {strides = array<i32>} : memref<8x8x8xbf16, #tpu.memory_space<vmem>>, vector<1x8x8xbf16>,
      %96 = vector.extract_strided_slice %53 {offsets = [0, 16], sizes = [8, 8], strides = [1, 1]} : vector<16x32xf32> to vector<8x8xf32>
      %97 = arith.truncf %96 : vector<8x8xf32> to vector<8x8xbf16>
      %c2_57 = arith.constant 2 : index
      %c0_58 = arith.constant 0 : index
      %c0_59 = arith.constant 0 : index
      %98 = vector.load %arg20[%c2_57, %c0_58, %c0_59] : memref<8x8x8xbf16, #tpu.memory_space<vmem>>, vector<1x8x8xbf16>
      %99 = vector.shape_cast %98 : vector<1x8x8xbf16> to vector<8x8xbf16>
      %100 = vector.shape_cast %97 : vector<8x8xbf16> to vector<1x8x8xbf16>
      tpu.vector_store %arg20[%c2_57, %c0_58, %c0_59], %100 {strides = array<i32>} : memref<8x8x8xbf16, #tpu.memory_space<vmem>>, vector<1x8x8xbf16>,
      %101 = vector.extract_strided_slice %51 {offsets = [0, 24], sizes = [8, 8], strides = [1, 1]} : vector<16x32xf32> to vector<8x8xf32>
      %102 = arith.truncf %101 : vector<8x8xf32> to vector<8x8xbf16>
      %c3 = arith.constant 3 : index
      %c0_60 = arith.constant 0 : index
      %c0_61 = arith.constant 0 : index
      %103 = vector.load %arg18[%c3, %c0_60, %c0_61] : memref<8x8x8xbf16, #tpu.memory_space<vmem>>, vector<1x8x8xbf16>
      %104 = vector.shape_cast %103 : vector<1x8x8xbf16> to vector<8x8xbf16>
      %105 = vector.shape_cast %102 : vector<8x8xbf16> to vector<1x8x8xbf16>
      tpu.vector_store %arg18[%c3, %c0_60, %c0_61], %105 {strides = array<i32>} : memref<8x8x8xbf16, #tpu.memory_space<vmem>>, vector<1x8x8xbf16>,
      %106 = vector.extract_strided_slice %52 {offsets = [0, 24], sizes = [8, 8], strides = [1, 1]} : vector<16x32xf32> to vector<8x8xf32>
      %107 = arith.truncf %106 : vector<8x8xf32> to vector<8x8xbf16>
      %c3_62 = arith.constant 3 : index
      %c0_63 = arith.constant 0 : index
      %c0_64 = arith.constant 0 : index
      %108 = vector.load %arg19[%c3_62, %c0_63, %c0_64] : memref<8x8x8xbf16, #tpu.memory_space<vmem>>, vector<1x8x8xbf16>
      %109 = vector.shape_cast %108 : vector<1x8x8xbf16> to vector<8x8xbf16>
      %110 = vector.shape_cast %107 : vector<8x8xbf16> to vector<1x8x8xbf16>
      tpu.vector_store %arg19[%c3_62, %c0_63, %c0_64], %110 {strides = array<i32>} : memref<8x8x8xbf16, #tpu.memory_space<vmem>>, vector<1x8x8xbf16>,
      %111 = vector.extract_strided_slice %53 {offsets = [0, 24], sizes = [8, 8], strides = [1, 1]} : vector<16x32xf32> to vector<8x8xf32>
      %112 = arith.truncf %111 : vector<8x8xf32> to vector<8x8xbf16>
      %c3_65 = arith.constant 3 : index
      %c0_66 = arith.constant 0 : index
      %c0_67 = arith.constant 0 : index
      %113 = vector.load %arg20[%c3_65, %c0_66, %c0_67] : memref<8x8x8xbf16, #tpu.memory_space<vmem>>, vector<1x8x8xbf16>
      %114 = vector.shape_cast %113 : vector<1x8x8xbf16> to vector<8x8xbf16>
      %115 = vector.shape_cast %112 : vector<8x8xbf16> to vector<1x8x8xbf16>
      tpu.vector_store %arg20[%c3_65, %c0_66, %c0_67], %115 {strides = array<i32>} : memref<8x8x8xbf16, #tpu.memory_space<vmem>>, vector<1x8x8xbf16>,
      %116 = vector.extract_strided_slice %51 {offsets = [8, 0], sizes = [8, 8], strides = [1, 1]} : vector<16x32xf32> to vector<8x8xf32>
      %117 = arith.truncf %116 : vector<8x8xf32> to vector<8x8xbf16>
      %c4 = arith.constant 4 : index
      %c0_68 = arith.constant 0 : index
      %c0_69 = arith.constant 0 : index
      %118 = vector.load %arg18[%c4, %c0_68, %c0_69] : memref<8x8x8xbf16, #tpu.memory_space<vmem>>, vector<1x8x8xbf16>
      %119 = vector.shape_cast %118 : vector<1x8x8xbf16> to vector<8x8xbf16>
      %120 = vector.shape_cast %117 : vector<8x8xbf16> to vector<1x8x8xbf16>
      tpu.vector_store %arg18[%c4, %c0_68, %c0_69], %120 {strides = array<i32>} : memref<8x8x8xbf16, #tpu.memory_space<vmem>>, vector<1x8x8xbf16>,
      %121 = vector.extract_strided_slice %52 {offsets = [8, 0], sizes = [8, 8], strides = [1, 1]} : vector<16x32xf32> to vector<8x8xf32>
      %122 = arith.truncf %121 : vector<8x8xf32> to vector<8x8xbf16>
      %c4_70 = arith.constant 4 : index
      %c0_71 = arith.constant 0 : index
      %c0_72 = arith.constant 0 : index
      %123 = vector.load %arg19[%c4_70, %c0_71, %c0_72] : memref<8x8x8xbf16, #tpu.memory_space<vmem>>, vector<1x8x8xbf16>
      %124 = vector.shape_cast %123 : vector<1x8x8xbf16> to vector<8x8xbf16>
      %125 = vector.shape_cast %122 : vector<8x8xbf16> to vector<1x8x8xbf16>
      tpu.vector_store %arg19[%c4_70, %c0_71, %c0_72], %125 {strides = array<i32>} : memref<8x8x8xbf16, #tpu.memory_space<vmem>>, vector<1x8x8xbf16>,
      %126 = vector.extract_strided_slice %53 {offsets = [8, 0], sizes = [8, 8], strides = [1, 1]} : vector<16x32xf32> to vector<8x8xf32>
      %127 = arith.truncf %126 : vector<8x8xf32> to vector<8x8xbf16>
      %c4_73 = arith.constant 4 : index
      %c0_74 = arith.constant 0 : index
      %c0_75 = arith.constant 0 : index
      %128 = vector.load %arg20[%c4_73, %c0_74, %c0_75] : memref<8x8x8xbf16, #tpu.memory_space<vmem>>, vector<1x8x8xbf16>
      %129 = vector.shape_cast %128 : vector<1x8x8xbf16> to vector<8x8xbf16>
      %130 = vector.shape_cast %127 : vector<8x8xbf16> to vector<1x8x8xbf16>
      tpu.vector_store %arg20[%c4_73, %c0_74, %c0_75], %130 {strides = array<i32>} : memref<8x8x8xbf16, #tpu.memory_space<vmem>>, vector<1x8x8xbf16>,
      %131 = vector.extract_strided_slice %51 {offsets = [8, 8], sizes = [8, 8], strides = [1, 1]} : vector<16x32xf32> to vector<8x8xf32>
      %132 = arith.truncf %131 : vector<8x8xf32> to vector<8x8xbf16>
      %c5 = arith.constant 5 : index
      %c0_76 = arith.constant 0 : index
      %c0_77 = arith.constant 0 : index
      %133 = vector.load %arg18[%c5, %c0_76, %c0_77] : memref<8x8x8xbf16, #tpu.memory_space<vmem>>, vector<1x8x8xbf16>
      %134 = vector.shape_cast %133 : vector<1x8x8xbf16> to vector<8x8xbf16>
      %135 = vector.shape_cast %132 : vector<8x8xbf16> to vector<1x8x8xbf16>
      tpu.vector_store %arg18[%c5, %c0_76, %c0_77], %135 {strides = array<i32>} : memref<8x8x8xbf16, #tpu.memory_space<vmem>>, vector<1x8x8xbf16>,
      %136 = vector.extract_strided_slice %52 {offsets = [8, 8], sizes = [8, 8], strides = [1, 1]} : vector<16x32xf32> to vector<8x8xf32>
      %137 = arith.truncf %136 : vector<8x8xf32> to vector<8x8xbf16>
      %c5_78 = arith.constant 5 : index
      %c0_79 = arith.constant 0 : index
      %c0_80 = arith.constant 0 : index
      %138 = vector.load %arg19[%c5_78, %c0_79, %c0_80] : memref<8x8x8xbf16, #tpu.memory_space<vmem>>, vector<1x8x8xbf16>
      %139 = vector.shape_cast %138 : vector<1x8x8xbf16> to vector<8x8xbf16>
      %140 = vector.shape_cast %137 : vector<8x8xbf16> to vector<1x8x8xbf16>
      tpu.vector_store %arg19[%c5_78, %c0_79, %c0_80], %140 {strides = array<i32>} : memref<8x8x8xbf16, #tpu.memory_space<vmem>>, vector<1x8x8xbf16>,
      %141 = vector.extract_strided_slice %53 {offsets = [8, 8], sizes = [8, 8], strides = [1, 1]} : vector<16x32xf32> to vector<8x8xf32>
      %142 = arith.truncf %141 : vector<8x8xf32> to vector<8x8xbf16>
      %c5_81 = arith.constant 5 : index
      %c0_82 = arith.constant 0 : index
      %c0_83 = arith.constant 0 : index
      %143 = vector.load %arg20[%c5_81, %c0_82, %c0_83] : memref<8x8x8xbf16, #tpu.memory_space<vmem>>, vector<1x8x8xbf16>
      %144 = vector.shape_cast %143 : vector<1x8x8xbf16> to vector<8x8xbf16>
      %145 = vector.shape_cast %142 : vector<8x8xbf16> to vector<1x8x8xbf16>
      tpu.vector_store %arg20[%c5_81, %c0_82, %c0_83], %145 {strides = array<i32>} : memref<8x8x8xbf16, #tpu.memory_space<vmem>>, vector<1x8x8xbf16>,
      %146 = vector.extract_strided_slice %51 {offsets = [8, 16], sizes = [8, 8], strides = [1, 1]} : vector<16x32xf32> to vector<8x8xf32>
      %147 = arith.truncf %146 : vector<8x8xf32> to vector<8x8xbf16>
      %c6 = arith.constant 6 : index
      %c0_84 = arith.constant 0 : index
      %c0_85 = arith.constant 0 : index
      %148 = vector.load %arg18[%c6, %c0_84, %c0_85] : memref<8x8x8xbf16, #tpu.memory_space<vmem>>, vector<1x8x8xbf16>
      %149 = vector.shape_cast %148 : vector<1x8x8xbf16> to vector<8x8xbf16>
      %150 = vector.shape_cast %147 : vector<8x8xbf16> to vector<1x8x8xbf16>
      tpu.vector_store %arg18[%c6, %c0_84, %c0_85], %150 {strides = array<i32>} : memref<8x8x8xbf16, #tpu.memory_space<vmem>>, vector<1x8x8xbf16>,
      %151 = vector.extract_strided_slice %52 {offsets = [8, 16], sizes = [8, 8], strides = [1, 1]} : vector<16x32xf32> to vector<8x8xf32>
      %152 = arith.truncf %151 : vector<8x8xf32> to vector<8x8xbf16>
      %c6_86 = arith.constant 6 : index
      %c0_87 = arith.constant 0 : index
      %c0_88 = arith.constant 0 : index
      %153 = vector.load %arg19[%c6_86, %c0_87, %c0_88] : memref<8x8x8xbf16, #tpu.memory_space<vmem>>, vector<1x8x8xbf16>
      %154 = vector.shape_cast %153 : vector<1x8x8xbf16> to vector<8x8xbf16>
      %155 = vector.shape_cast %152 : vector<8x8xbf16> to vector<1x8x8xbf16>
      tpu.vector_store %arg19[%c6_86, %c0_87, %c0_88], %155 {strides = array<i32>} : memref<8x8x8xbf16, #tpu.memory_space<vmem>>, vector<1x8x8xbf16>,
      %156 = vector.extract_strided_slice %53 {offsets = [8, 16], sizes = [8, 8], strides = [1, 1]} : vector<16x32xf32> to vector<8x8xf32>
      %157 = arith.truncf %156 : vector<8x8xf32> to vector<8x8xbf16>
      %c6_89 = arith.constant 6 : index
      %c0_90 = arith.constant 0 : index
      %c0_91 = arith.constant 0 : index
      %158 = vector.load %arg20[%c6_89, %c0_90, %c0_91] : memref<8x8x8xbf16, #tpu.memory_space<vmem>>, vector<1x8x8xbf16>
      %159 = vector.shape_cast %158 : vector<1x8x8xbf16> to vector<8x8xbf16>
      %160 = vector.shape_cast %157 : vector<8x8xbf16> to vector<1x8x8xbf16>
      tpu.vector_store %arg20[%c6_89, %c0_90, %c0_91], %160 {strides = array<i32>} : memref<8x8x8xbf16, #tpu.memory_space<vmem>>, vector<1x8x8xbf16>,
      %161 = vector.extract_strided_slice %51 {offsets = [8, 24], sizes = [8, 8], strides = [1, 1]} : vector<16x32xf32> to vector<8x8xf32>
      %162 = arith.truncf %161 : vector<8x8xf32> to vector<8x8xbf16>
      %c7 = arith.constant 7 : index
      %c0_92 = arith.constant 0 : index
      %c0_93 = arith.constant 0 : index
      %163 = vector.load %arg18[%c7, %c0_92, %c0_93] : memref<8x8x8xbf16, #tpu.memory_space<vmem>>, vector<1x8x8xbf16>
      %164 = vector.shape_cast %163 : vector<1x8x8xbf16> to vector<8x8xbf16>
      %165 = vector.shape_cast %162 : vector<8x8xbf16> to vector<1x8x8xbf16>
      tpu.vector_store %arg18[%c7, %c0_92, %c0_93], %165 {strides = array<i32>} : memref<8x8x8xbf16, #tpu.memory_space<vmem>>, vector<1x8x8xbf16>,
      %166 = vector.extract_strided_slice %52 {offsets = [8, 24], sizes = [8, 8], strides = [1, 1]} : vector<16x32xf32> to vector<8x8xf32>
      %167 = arith.truncf %166 : vector<8x8xf32> to vector<8x8xbf16>
      %c7_94 = arith.constant 7 : index
      %c0_95 = arith.constant 0 : index
      %c0_96 = arith.constant 0 : index
      %168 = vector.load %arg19[%c7_94, %c0_95, %c0_96] : memref<8x8x8xbf16, #tpu.memory_space<vmem>>, vector<1x8x8xbf16>
      %169 = vector.shape_cast %168 : vector<1x8x8xbf16> to vector<8x8xbf16>
      %170 = vector.shape_cast %167 : vector<8x8xbf16> to vector<1x8x8xbf16>
      tpu.vector_store %arg19[%c7_94, %c0_95, %c0_96], %170 {strides = array<i32>} : memref<8x8x8xbf16, #tpu.memory_space<vmem>>, vector<1x8x8xbf16>,
      %171 = vector.extract_strided_slice %53 {offsets = [8, 24], sizes = [8, 8], strides = [1, 1]} : vector<16x32xf32> to vector<8x8xf32>
      %172 = arith.truncf %171 : vector<8x8xf32> to vector<8x8xbf16>
      %c7_97 = arith.constant 7 : index
      %c0_98 = arith.constant 0 : index
      %c0_99 = arith.constant 0 : index
      %173 = vector.load %arg20[%c7_97, %c0_98, %c0_99] : memref<8x8x8xbf16, #tpu.memory_space<vmem>>, vector<1x8x8xbf16>
      %174 = vector.shape_cast %173 : vector<1x8x8xbf16> to vector<8x8xbf16>
      %175 = vector.shape_cast %172 : vector<8x8xbf16> to vector<1x8x8xbf16>
      tpu.vector_store %arg20[%c7_97, %c0_98, %c0_99], %175 {strides = array<i32>} : memref<8x8x8xbf16, #tpu.memory_space<vmem>>, vector<1x8x8xbf16>,
      %176 = tpu.iota {dimensions = array<i32: 0>} : vector<8x8xi32>
      %177 = tpu.iota {dimensions = array<i32: 1>} : vector<8x8xi32>
      %178 = arith.cmpi sgt, %177, %176 : vector<8x8xi32>
      %cst_100 = arith.constant -1.000000e+04 : f32
      %cst_101 = arith.constant 0.000000e+00 : f32
      %179 = vector.broadcast %cst_100 : f32 to vector<8x8xf32>
      %180 = vector.broadcast %cst_101 : f32 to vector<8x8xf32>
      %181 = arith.select %178, %179, %180 : vector<8x8xi1>, vector<8x8xf32>
      %c0_i32_102 = arith.constant 0 : i32
      %c2_i32 = arith.constant 2 : i32
      %182 = arith.addi %c0_i32_102, %c2_i32 : i32
      %c1_i32_103 = arith.constant 1 : i32
      scf.for %arg25 = %c0_i32_102 to %182 step %c1_i32_103  : i32 {
        %c4_i32 = arith.constant 4 : i32
        %243 = arith.muli %arg25, %c4_i32 : i32
        %244 = arith.index_cast %243 : i32 to index
        %c0_165 = arith.constant 0 : index
        %c0_166 = arith.constant 0 : index
        %245 = vector.load %arg18[%244, %c0_165, %c0_166] : memref<8x8x8xbf16, #tpu.memory_space<vmem>>, vector<4x8x8xbf16>
        %246 = arith.index_cast %243 : i32 to index
        %c0_167 = arith.constant 0 : index
        %c0_168 = arith.constant 0 : index
        %247 = vector.load %arg19[%246, %c0_167, %c0_168] : memref<8x8x8xbf16, #tpu.memory_space<vmem>>, vector<4x8x8xbf16>
        %248 = arith.index_cast %243 : i32 to index
        %c0_169 = arith.constant 0 : index
        %c0_170 = arith.constant 0 : index
        %249 = vector.load %arg20[%248, %c0_169, %c0_170] : memref<8x8x8xbf16, #tpu.memory_space<vmem>>, vector<4x8x8xbf16>
        "tpu.trace_start"() <{level = 10 : i32, message = "gqd,gkd->gqk"}> : () -> ()
        %cst_171 = arith.constant dense<0.000000e+00> : vector<4x8x8xf32>
        %250 = tpu.matmul %245, %247, %cst_171 {dimension_numbers = #tpu.dot_dimension_numbers<[2], [2], [1], [1], [0, 0, 0, 1, 1, 1], [0], [0]>} : vector<4x8x8xbf16>, vector<4x8x8xbf16>, vector<4x8x8xf32> -> vector<4x8x8xf32>
        "tpu.trace_stop"() : () -> ()
        %251 = vector.shape_cast %181 : vector<8x8xf32> to vector<1x8x8xf32>
        %252 = vector.broadcast %251 : vector<1x8x8xf32> to vector<4x8x8xf32>
        %253 = arith.addf %250, %252 : vector<4x8x8xf32>
        %cst_172 = arith.constant dense<0xFF800000> : vector<4x8xf32>
        %254 = vector.multi_reduction <maximumf>, %253, %cst_172 [2] : vector<4x8x8xf32> to vector<4x8xf32>
        %255 = vector.shape_cast %254 : vector<4x8xf32> to vector<4x8x1xf32>
        %256 = vector.broadcast %255 : vector<4x8x1xf32> to vector<4x8x8xf32>
        %257 = arith.subf %253, %256 : vector<4x8x8xf32>
        %258 = math.exp %257 : vector<4x8x8xf32>
        %cst_173 = arith.constant dense<0.000000e+00> : vector<4x8xf32>
        %259 = vector.multi_reduction <add>, %258, %cst_173 [2] : vector<4x8x8xf32> to vector<4x8xf32>
        %260 = vector.shape_cast %259 : vector<4x8xf32> to vector<4x8x1xf32>
        %261 = tpu.reciprocal %260 {approx = true} : vector<4x8x1xf32> -> vector<4x8x1xf32>
        %262 = vector.broadcast %261 : vector<4x8x1xf32> to vector<4x8x8xf32>
        %263 = arith.mulf %258, %262 : vector<4x8x8xf32>
        %264 = arith.truncf %263 : vector<4x8x8xf32> to vector<4x8x8xbf16>
        "tpu.trace_start"() <{level = 10 : i32, message = "gqk,gkd->gqd"}> : () -> ()
        %cst_174 = arith.constant dense<0.000000e+00> : vector<4x8x8xf32>
        %265 = tpu.matmul %264, %249, %cst_174 {dimension_numbers = #tpu.dot_dimension_numbers<[2], [1], [1], [2], [0, 0, 0, 1, 1, 2], [0], [0]>} : vector<4x8x8xbf16>, vector<4x8x8xbf16>, vector<4x8x8xf32> -> vector<4x8x8xf32>
        "tpu.trace_stop"() : () -> ()
        %266 = arith.truncf %265 : vector<4x8x8xf32> to vector<4x8x8xbf16>
        %267 = arith.index_cast %243 : i32 to index
        %c0_175 = arith.constant 0 : index
        %c0_176 = arith.constant 0 : index
        %268 = vector.load %arg18[%267, %c0_175, %c0_176] : memref<8x8x8xbf16, #tpu.memory_space<vmem>>, vector<4x8x8xbf16>
        tpu.vector_store %arg18[%267, %c0_175, %c0_176], %266 {strides = array<i32>} : memref<8x8x8xbf16, #tpu.memory_space<vmem>>, vector<4x8x8xbf16>,
      }
      %c2_i32_104 = arith.constant 2 : i32
      %c0_105 = arith.constant 0 : index
      %c0_106 = arith.constant 0 : index
      %c0_107 = arith.constant 0 : index
      %183 = vector.load %arg18[%c0_105, %c0_106, %c0_107] : memref<8x8x8xbf16, #tpu.memory_space<vmem>>, vector<1x8x8xbf16>
      %184 = vector.shape_cast %183 : vector<1x8x8xbf16> to vector<8x8xbf16>
      %c0_108 = arith.constant 0 : index
      %c0_109 = arith.constant 0 : index
      %185 = vector.load %arg21[%c0_108, %c0_109] : memref<16x32xbf16, #tpu.memory_space<vmem>>, vector<8x8xbf16>
      tpu.vector_store %arg21[%c0_108, %c0_109], %184 {strides = array<i32>} : memref<16x32xbf16, #tpu.memory_space<vmem>>, vector<8x8xbf16>,
      %c1_110 = arith.constant 1 : index
      %c0_111 = arith.constant 0 : index
      %c0_112 = arith.constant 0 : index
      %186 = vector.load %arg18[%c1_110, %c0_111, %c0_112] : memref<8x8x8xbf16, #tpu.memory_space<vmem>>, vector<1x8x8xbf16>
      %187 = vector.shape_cast %186 : vector<1x8x8xbf16> to vector<8x8xbf16>
      %c0_113 = arith.constant 0 : index
      %c8 = arith.constant 8 : index
      %188 = vector.load %arg21[%c0_113, %c8] : memref<16x32xbf16, #tpu.memory_space<vmem>>, vector<8x8xbf16>
      tpu.vector_store %arg21[%c0_113, %c8], %187 {strides = array<i32>} : memref<16x32xbf16, #tpu.memory_space<vmem>>, vector<8x8xbf16>,
      %c2_114 = arith.constant 2 : index
      %c0_115 = arith.constant 0 : index
      %c0_116 = arith.constant 0 : index
      %189 = vector.load %arg18[%c2_114, %c0_115, %c0_116] : memref<8x8x8xbf16, #tpu.memory_space<vmem>>, vector<1x8x8xbf16>
      %190 = vector.shape_cast %189 : vector<1x8x8xbf16> to vector<8x8xbf16>
      %c0_117 = arith.constant 0 : index
      %c16 = arith.constant 16 : index
      %191 = vector.load %arg21[%c0_117, %c16] : memref<16x32xbf16, #tpu.memory_space<vmem>>, vector<8x8xbf16>
      tpu.vector_store %arg21[%c0_117, %c16], %190 {strides = array<i32>} : memref<16x32xbf16, #tpu.memory_space<vmem>>, vector<8x8xbf16>,
      %c3_118 = arith.constant 3 : index
      %c0_119 = arith.constant 0 : index
      %c0_120 = arith.constant 0 : index
      %192 = vector.load %arg18[%c3_118, %c0_119, %c0_120] : memref<8x8x8xbf16, #tpu.memory_space<vmem>>, vector<1x8x8xbf16>
      %193 = vector.shape_cast %192 : vector<1x8x8xbf16> to vector<8x8xbf16>
      %c0_121 = arith.constant 0 : index
      %c24 = arith.constant 24 : index
      %194 = vector.load %arg21[%c0_121, %c24] : memref<16x32xbf16, #tpu.memory_space<vmem>>, vector<8x8xbf16>
      tpu.vector_store %arg21[%c0_121, %c24], %193 {strides = array<i32>} : memref<16x32xbf16, #tpu.memory_space<vmem>>, vector<8x8xbf16>,
      %c4_122 = arith.constant 4 : index
      %c0_123 = arith.constant 0 : index
      %c0_124 = arith.constant 0 : index
      %195 = vector.load %arg18[%c4_122, %c0_123, %c0_124] : memref<8x8x8xbf16, #tpu.memory_space<vmem>>, vector<1x8x8xbf16>
      %196 = vector.shape_cast %195 : vector<1x8x8xbf16> to vector<8x8xbf16>
      %c8_125 = arith.constant 8 : index
      %c0_126 = arith.constant 0 : index
      %197 = vector.load %arg21[%c8_125, %c0_126] : memref<16x32xbf16, #tpu.memory_space<vmem>>, vector<8x8xbf16>
      tpu.vector_store %arg21[%c8_125, %c0_126], %196 {strides = array<i32>} : memref<16x32xbf16, #tpu.memory_space<vmem>>, vector<8x8xbf16>,
      %c5_127 = arith.constant 5 : index
      %c0_128 = arith.constant 0 : index
      %c0_129 = arith.constant 0 : index
      %198 = vector.load %arg18[%c5_127, %c0_128, %c0_129] : memref<8x8x8xbf16, #tpu.memory_space<vmem>>, vector<1x8x8xbf16>
      %199 = vector.shape_cast %198 : vector<1x8x8xbf16> to vector<8x8xbf16>
      %c8_130 = arith.constant 8 : index
      %c8_131 = arith.constant 8 : index
      %200 = vector.load %arg21[%c8_130, %c8_131] : memref<16x32xbf16, #tpu.memory_space<vmem>>, vector<8x8xbf16>
      tpu.vector_store %arg21[%c8_130, %c8_131], %199 {strides = array<i32>} : memref<16x32xbf16, #tpu.memory_space<vmem>>, vector<8x8xbf16>,
      %c6_132 = arith.constant 6 : index
      %c0_133 = arith.constant 0 : index
      %c0_134 = arith.constant 0 : index
      %201 = vector.load %arg18[%c6_132, %c0_133, %c0_134] : memref<8x8x8xbf16, #tpu.memory_space<vmem>>, vector<1x8x8xbf16>
      %202 = vector.shape_cast %201 : vector<1x8x8xbf16> to vector<8x8xbf16>
      %c8_135 = arith.constant 8 : index
      %c16_136 = arith.constant 16 : index
      %203 = vector.load %arg21[%c8_135, %c16_136] : memref<16x32xbf16, #tpu.memory_space<vmem>>, vector<8x8xbf16>
      tpu.vector_store %arg21[%c8_135, %c16_136], %202 {strides = array<i32>} : memref<16x32xbf16, #tpu.memory_space<vmem>>, vector<8x8xbf16>,
      %c7_137 = arith.constant 7 : index
      %c0_138 = arith.constant 0 : index
      %c0_139 = arith.constant 0 : index
      %204 = vector.load %arg18[%c7_137, %c0_138, %c0_139] : memref<8x8x8xbf16, #tpu.memory_space<vmem>>, vector<1x8x8xbf16>
      %205 = vector.shape_cast %204 : vector<1x8x8xbf16> to vector<8x8xbf16>
      %c8_140 = arith.constant 8 : index
      %c24_141 = arith.constant 24 : index
      %206 = vector.load %arg21[%c8_140, %c24_141] : memref<16x32xbf16, #tpu.memory_space<vmem>>, vector<8x8xbf16>
      tpu.vector_store %arg21[%c8_140, %c24_141], %205 {strides = array<i32>} : memref<16x32xbf16, #tpu.memory_space<vmem>>, vector<8x8xbf16>,
      %c0_142 = arith.constant 0 : index
      %c0_143 = arith.constant 0 : index
      %207 = vector.load %arg21[%c0_142, %c0_143] : memref<16x32xbf16, #tpu.memory_space<vmem>>, vector<16x32xbf16>
      %c0_144 = arith.constant 0 : index
      %c0_145 = arith.constant 0 : index
      %208 = vector.load %arg7[%c0_144, %c0_145] : memref<32x32xbf16, #tpu.memory_space<vmem>>, vector<32x32xbf16>
      %cst_146 = arith.constant dense<0.000000e+00> : vector<16x32xf32>
      %209 = tpu.matmul %207, %208, %cst_146 {dimension_numbers = #tpu.dot_dimension_numbers<[1], [0], [0], [1], [0, 0, 1, 1], [], []>} : vector<16x32xbf16>, vector<32x32xbf16>, vector<16x32xf32> -> vector<16x32xf32>
      %c0_147 = arith.constant 0 : index
      %c0_148 = arith.constant 0 : index
      %210 = vector.load %arg8[%c0_147, %c0_148] : memref<1x32xf32, #tpu.memory_space<vmem>>, vector<1x32xf32>
      %211 = vector.broadcast %210 : vector<1x32xf32> to vector<16x32xf32>
      %212 = arith.addf %209, %211 : vector<16x32xf32>
      %213 = arith.addf %20, %212 : vector<16x32xf32>
      %c0_149 = arith.constant 0 : index
      %c0_150 = arith.constant 0 : index
      %214 = vector.load %arg22[%c0_149, %c0_150] : memref<16x32xf32, #tpu.memory_space<vmem>>, vector<16x32xf32>
      tpu.vector_store %arg22[%c0_149, %c0_150], %213 {strides = array<i32>} : memref<16x32xf32, #tpu.memory_space<vmem>>, vector<16x32xf32>,
      %c0_151 = arith.constant 0 : index
      %c0_152 = arith.constant 0 : index
      %215 = vector.load %arg9[%c0_151, %c0_152] : memref<1x32xf32, #tpu.memory_space<vmem>>, vector<1x32xf32>
      %c0_153 = arith.constant 0 : index
      %c0_154 = arith.constant 0 : index
      %216 = vector.load %arg10[%c0_153, %c0_154] : memref<1x32xf32, #tpu.memory_space<vmem>>, vector<1x32xf32>
      %cst_155 = arith.constant dense<0.000000e+00> : vector<16xf32>
      %217 = vector.multi_reduction <add>, %213, %cst_155 [1] : vector<16x32xf32> to vector<16xf32>
      %218 = vector.shape_cast %217 : vector<16xf32> to vector<16x1xf32>
      %cst_156 = arith.constant 3.200000e+01 : f32
      %219 = vector.broadcast %cst_156 : f32 to vector<16x1xf32>
      %220 = arith.divf %218, %219 : vector<16x1xf32>
      %221 = vector.broadcast %220 : vector<16x1xf32> to vector<16x32xf32>
      %222 = arith.subf %213, %221 : vector<16x32xf32>
      %223 = arith.mulf %222, %222 : vector<16x32xf32>
      %cst_157 = arith.constant dense<0.000000e+00> : vector<16xf32>
      %224 = vector.multi_reduction <add>, %223, %cst_157 [1] : vector<16x32xf32> to vector<16xf32>
      %225 = vector.shape_cast %224 : vector<16xf32> to vector<16x1xf32>
      %cst_158 = arith.constant 3.200000e+01 : f32
      %226 = vector.broadcast %cst_158 : f32 to vector<16x1xf32>
      %227 = arith.divf %225, %226 : vector<16x1xf32>
      %228 = vector.broadcast %220 : vector<16x1xf32> to vector<16x32xf32>
      %229 = arith.subf %213, %228 : vector<16x32xf32>
      %cst_159 = arith.constant 9.99999997E-7 : f32
      %230 = vector.broadcast %cst_159 : f32 to vector<16x1xf32>
      %231 = arith.addf %227, %230 : vector<16x1xf32>
      %232 = math.rsqrt %231 : vector<16x1xf32>
      %233 = vector.broadcast %232 : vector<16x1xf32> to vector<16x32xf32>
      %234 = arith.mulf %229, %233 : vector<16x32xf32>
      %235 = vector.broadcast %215 : vector<1x32xf32> to vector<16x32xf32>
      %236 = arith.mulf %234, %235 : vector<16x32xf32>
      %237 = vector.broadcast %216 : vector<1x32xf32> to vector<16x32xf32>
      %238 = arith.addf %236, %237 : vector<16x32xf32>
      %239 = arith.truncf %238 : vector<16x32xf32> to vector<16x32xbf16>
      %c0_160 = arith.constant 0 : index
      %c0_161 = arith.constant 0 : index
      %240 = vector.load %arg23[%c0_160, %c0_161] : memref<16x32xbf16, #tpu.memory_space<vmem>>, vector<16x32xbf16>
      tpu.vector_store %arg23[%c0_160, %c0_161], %239 {strides = array<i32>} : memref<16x32xbf16, #tpu.memory_space<vmem>>, vector<16x32xbf16>,
      %cst_162 = arith.constant 0.000000e+00 : f32
      %241 = vector.broadcast %cst_162 : f32 to vector<16x32xf32>
      %c0_163 = arith.constant 0 : index
      %c0_164 = arith.constant 0 : index
      %242 = vector.load %arg24[%c0_163, %c0_164] : memref<16x32xf32, #tpu.memory_space<vmem>>, vector<16x32xf32>
      tpu.vector_store %arg24[%c0_163, %c0_164], %241 {strides = array<i32>} : memref<16x32xf32, #tpu.memory_space<vmem>>, vector<16x32xf32>,
    } else {
    }
    %c0 = arith.constant 0 : index
    %c0_1 = arith.constant 0 : index
    %3 = vector.load %arg23[%c0, %c0_1] : memref<16x32xbf16, #tpu.memory_space<vmem>>, vector<16x32xbf16>
    %c0_2 = arith.constant 0 : index
    %c0_3 = arith.constant 0 : index
    %4 = vector.load %arg11[%c0_2, %c0_3] : memref<32x128xbf16, #tpu.memory_space<vmem>>, vector<32x128xbf16>
    %cst = arith.constant dense<0.000000e+00> : vector<16x128xf32>
    %5 = tpu.matmul %3, %4, %cst {dimension_numbers = #tpu.dot_dimension_numbers<[1], [0], [0], [1], [0, 0, 1, 1], [], []>} : vector<16x32xbf16>, vector<32x128xbf16>, vector<16x128xf32> -> vector<16x128xf32>
    %c0_4 = arith.constant 0 : index
    %c0_5 = arith.constant 0 : index
    %6 = vector.load %arg12[%c0_4, %c0_5] : memref<1x128xf32, #tpu.memory_space<vmem>>, vector<1x128xf32>
    %7 = vector.broadcast %6 : vector<1x128xf32> to vector<16x128xf32>
    %8 = arith.addf %5, %7 : vector<16x128xf32>
    %cst_6 = arith.constant 0.000000e+00 : f32
    %9 = vector.broadcast %cst_6 : f32 to vector<16x128xf32>
    %10 = arith.maximumf %8, %9 : vector<16x128xf32>
    %c0_7 = arith.constant 0 : index
    %c0_8 = arith.constant 0 : index
    %11 = vector.load %arg24[%c0_7, %c0_8] : memref<16x32xf32, #tpu.memory_space<vmem>>, vector<16x32xf32>
    %12 = arith.truncf %10 : vector<16x128xf32> to vector<16x128xbf16>
    %c0_9 = arith.constant 0 : index
    %c0_10 = arith.constant 0 : index
    %13 = vector.load %arg13[%c0_9, %c0_10] : memref<128x32xbf16, #tpu.memory_space<vmem>>, vector<128x32xbf16>
    %cst_11 = arith.constant dense<0.000000e+00> : vector<16x32xf32>
    %14 = tpu.matmul %12, %13, %cst_11 {dimension_numbers = #tpu.dot_dimension_numbers<[1], [0], [0], [1], [0, 0, 1, 1], [], []>} : vector<16x128xbf16>, vector<128x32xbf16>, vector<16x32xf32> -> vector<16x32xf32>
    %15 = arith.addf %11, %14 : vector<16x32xf32>
    %c0_12 = arith.constant 0 : index
    %c0_13 = arith.constant 0 : index
    %16 = vector.load %arg24[%c0_12, %c0_13] : memref<16x32xf32, #tpu.memory_space<vmem>>, vector<16x32xf32>
    tpu.vector_store %arg24[%c0_12, %c0_13], %15 {strides = array<i32>} : memref<16x32xf32, #tpu.memory_space<vmem>>, vector<16x32xf32>,
    %c1_i32 = arith.constant 1 : i32
    %17 = arith.cmpi eq, %arg1, %c1_i32 : i32
    %18 = arith.extui %17 : i1 to i32
    %c0_i32_14 = arith.constant 0 : i32
    %19 = arith.cmpi ne, %18, %c0_i32_14 : i32
    scf.if %19 {
      %c0_15 = arith.constant 0 : index
      %c0_16 = arith.constant 0 : index
      %20 = vector.load %arg22[%c0_15, %c0_16] : memref<16x32xf32, #tpu.memory_space<vmem>>, vector<16x32xf32>
      %c0_17 = arith.constant 0 : index
      %c0_18 = arith.constant 0 : index
      %21 = vector.load %arg24[%c0_17, %c0_18] : memref<16x32xf32, #tpu.memory_space<vmem>>, vector<16x32xf32>
      %22 = arith.addf %20, %21 : vector<16x32xf32>
      %c0_19 = arith.constant 0 : index
      %c0_20 = arith.constant 0 : index
      %23 = vector.load %arg14[%c0_19, %c0_20] : memref<1x32xf32, #tpu.memory_space<vmem>>, vector<1x32xf32>
      %24 = vector.broadcast %23 : vector<1x32xf32> to vector<16x32xf32>
      %25 = arith.addf %22, %24 : vector<16x32xf32>
      %c0_21 = arith.constant 0 : index
      %c0_22 = arith.constant 0 : index
      %26 = vector.load %arg15[%c0_21, %c0_22] : memref<16x32xf32, #tpu.memory_space<vmem>>, vector<16x32xf32>
      tpu.vector_store %arg15[%c0_21, %c0_22], %25 {strides = array<i32>} : memref<16x32xf32, #tpu.memory_space<vmem>>, vector<16x32xf32>,
    } else {
    }
    return
  }
  func.func @transform_0(%arg0: i32, %arg1: i32) -> (i32, i32) {
    %c0_i32 = arith.constant 0 : i32
    %c0_i32_0 = arith.constant 0 : i32
    return %arg0, %c0_i32 : i32, i32
  }
  func.func @transform_1(%arg0: i32, %arg1: i32) -> (i32, i32) {
    %c0_i32 = arith.constant 0 : i32
    %c0_i32_0 = arith.constant 0 : i32
    %c0_i32_1 = arith.constant 0 : i32
    return %c0_i32, %c0_i32_0 : i32, i32
  }
  func.func @transform_2(%arg0: i32, %arg1: i32) -> (i32, i32) {
    %c0_i32 = arith.constant 0 : i32
    %c0_i32_0 = arith.constant 0 : i32
    %c0_i32_1 = arith.constant 0 : i32
    return %c0_i32, %c0_i32_0 : i32, i32
  }
  func.func @transform_3(%arg0: i32, %arg1: i32) -> (i32, i32) {
    %c0_i32 = arith.constant 0 : i32
    %c0_i32_0 = arith.constant 0 : i32
    %c0_i32_1 = arith.constant 0 : i32
    return %c0_i32, %c0_i32_0 : i32, i32
  }
  func.func @transform_4(%arg0: i32, %arg1: i32) -> (i32, i32) {
    %c0_i32 = arith.constant 0 : i32
    %c0_i32_0 = arith.constant 0 : i32
    %c0_i32_1 = arith.constant 0 : i32
    return %c0_i32, %c0_i32_0 : i32, i32
  }
  func.func @transform_5(%arg0: i32, %arg1: i32) -> (i32, i32) {
    %c0_i32 = arith.constant 0 : i32
    %c0_i32_0 = arith.constant 0 : i32
    %c0_i32_1 = arith.constant 0 : i32
    return %c0_i32, %c0_i32_0 : i32, i32
  }
  func.func @transform_6(%arg0: i32, %arg1: i32) -> (i32, i32) {
    %c0_i32 = arith.constant 0 : i32
    %c0_i32_0 = arith.constant 0 : i32
    %c0_i32_1 = arith.constant 0 : i32
    return %c0_i32, %c0_i32_0 : i32, i32
  }
  func.func @transform_7(%arg0: i32, %arg1: i32) -> (i32, i32) {
    %c0_i32 = arith.constant 0 : i32
    %c0_i32_0 = arith.constant 0 : i32
    %c0_i32_1 = arith.constant 0 : i32
    return %c0_i32, %c0_i32_0 : i32, i32
  }
  func.func @transform_8(%arg0: i32, %arg1: i32) -> (i32, i32) {
    %c0_i32 = arith.constant 0 : i32
    %c0_i32_0 = arith.constant 0 : i32
    %c0_i32_1 = arith.constant 0 : i32
    return %c0_i32, %c0_i32_0 : i32, i32
  }
  func.func @transform_9(%arg0: i32, %arg1: i32) -> (i32, i32) {
    %c0_i32 = arith.constant 0 : i32
    %c0_i32_0 = arith.constant 0 : i32
    return %c0_i32, %arg1 : i32, i32
  }
  func.func @transform_10(%arg0: i32, %arg1: i32) -> (i32, i32) {
    %c0_i32 = arith.constant 0 : i32
    %c0_i32_0 = arith.constant 0 : i32
    return %c0_i32, %arg1 : i32, i32
  }
  func.func @transform_11(%arg0: i32, %arg1: i32) -> (i32, i32) {
    %c0_i32 = arith.constant 0 : i32
    %c0_i32_0 = arith.constant 0 : i32
    return %arg1, %c0_i32 : i32, i32
  }
  func.func @transform_12(%arg0: i32, %arg1: i32) -> (i32, i32) {
    %c0_i32 = arith.constant 0 : i32
    %c0_i32_0 = arith.constant 0 : i32
    %c0_i32_1 = arith.constant 0 : i32
    return %c0_i32, %c0_i32_0 : i32, i32
  }
  func.func @transform_13(%arg0: i32, %arg1: i32) -> (i32, i32) {
    %c0_i32 = arith.constant 0 : i32
    %c0_i32_0 = arith.constant 0 : i32
    return %arg0, %c0_i32 : i32, i32
  }
  func.func @transform_14(%arg0: i32, %arg1: i32) -> (i32, i32) {
    %c0_i32 = arith.constant 0 : i32
    %c0_i32_0 = arith.constant 0 : i32
    return %arg0, %c0_i32 : i32, i32
  }
  func.func @transform_15(%arg0: i32, %arg1: i32) -> (i32, i32) {
    %c0_i32 = arith.constant 0 : i32
    %c0_i32_0 = arith.constant 0 : i32
    return %arg0, %c0_i32 : i32, i32
  }
}

</mosaic_0001>

<llo_original>
// kernel: tpu_custom_call.1
$region0: #{tpu_custom_call.1}
  #allocation0 [shape = 'u32[]', space=smem, size = 0x4, offset = 0x4, fixed_abs, tag = 'smem constant byte address 0x4 - core index']
  #allocation1 [shape = 'u32[144,128]{1,0:T(1,128)}', space=vmem, size = 0x12000, scoped, tag = 'internal scratch']
  #allocation2 [shape = 'bf16[8,8,8]{2,1,0:T(8,128)(2,1)}', space=vmem, size = 0x4000, scoped, tag = 'scratch operand']
  #allocation3 [shape = 'bf16[8,8,8]{2,1,0:T(8,128)(2,1)}', space=vmem, size = 0x4000, scoped, tag = 'scratch operand']
  #allocation4 [shape = 'bf16[8,8,8]{2,1,0:T(8,128)(2,1)}', space=vmem, size = 0x4000, scoped, tag = 'scratch operand']
  #allocation5 [shape = 'bf16[16,32]{1,0:T(8,128)(2,1)}', space=vmem, size = 0x1000, scoped, tag = 'scratch operand']
  #allocation6 [shape = 'f32[16,32]{1,0:T(8,128)}', space=vmem, size = 0x2000, scoped, tag = 'scratch operand']
  #allocation7 [shape = 'bf16[16,32]{1,0:T(8,128)(2,1)}', space=vmem, size = 0x1000, scoped, tag = 'scratch operand']
  #allocation8 [shape = 'f32[16,32]{1,0:T(8,128)}', space=vmem, size = 0x2000, scoped, tag = 'scratch operand']
  %s0 = inlined_call_operand.vmem [shape: f32[16,32], index: 0, kind: input, shape index: {}]
  %s1 = inlined_call_operand.vmem [shape: f32[1,32], index: 1, kind: input, shape index: {}]
  %s2 = inlined_call_operand.vmem [shape: f32[1,32], index: 2, kind: input, shape index: {}]
  %s3 = inlined_call_operand.vmem [shape: bf16[32,96], index: 3, kind: input, shape index: {}]
  %s4 = inlined_call_operand.vmem [shape: f32[1,96], index: 4, kind: input, shape index: {}]
  %s5 = inlined_call_operand.vmem [shape: bf16[32,32], index: 5, kind: input, shape index: {}]
  %s6 = inlined_call_operand.vmem [shape: f32[1,32], index: 6, kind: input, shape index: {}]
  %s7 = inlined_call_operand.vmem [shape: f32[1,32], index: 7, kind: input, shape index: {}]
  %s8 = inlined_call_operand.vmem [shape: f32[1,32], index: 8, kind: input, shape index: {}]
  %s9 = inlined_call_operand.vmem [shape: bf16[32,256], index: 9, kind: input, shape index: {}]
  %s10 = inlined_call_operand.vmem [shape: f32[1,256], index: 10, kind: input, shape index: {}]
  %s11 = inlined_call_operand.vmem [shape: bf16[256,32], index: 11, kind: input, shape index: {}]
  %s12 = inlined_call_operand.vmem [shape: f32[1,32], index: 12, kind: input, shape index: {}]
  %s13 = inlined_call_operand.hbm [shape: f32[16,32], index: 13, kind: output, shape index: {0}]
  %s14 = inlined_call_operand.hbm [shape: f32[16,32], index: 14, kind: output, shape index: {1}]
  %s15 = inlined_call_operand.hbm [shape: f32[16,32], index: 15, kind: output, shape index: {2}]
  %16 = xla_tuple %s13, %s14, %s15
  %s17 = sld [smem:[#allocation0]]
  $region157: #{tpu_custom_call.1} parent=0
    _
  %s19 = ssub.s32 1, %s17
  %s20 = scalar_select 0, %s19, %s17
  $region1: #{tpu_custom_call.1} parent=0
    #allocation9 [shape = 'u8[16384]{0}', space=vmem, size = 0x4000, scoped, tag = 'input window, operand 9']
    #allocation10 [shape = 'u8[8192]{0}', space=vmem, size = 0x2000, scoped, tag = 'output window, operand 0, single buffered']
    #allocation11 [shape = 's32[2]{0}', space=sflag, size = 0x8, scoped, tag = 'scoped memory for tpu_custom_call.1']
    #allocation12 [shape = 'u8[8192]{0}', space=vmem, size = 0x2000, scoped, tag = 'output window, operand 1, single buffered']
    #allocation13 [shape = 's32[1]{0}', space=sflag, size = 0x4, scoped, tag = 'scoped memory for tpu_custom_call.1']
    #allocation14 [shape = 'u8[8192]{0}', space=vmem, size = 0x2000, scoped, tag = 'output window, operand 2, single buffered']
    %21 = vsyncpa [#allocation11], 0
    %22 = vsyncpa [#allocation13], 0
    loop: start=0, step=1, limit=4
    $region2: #{tpu_custom_call.1} parent=1 // loop_pre_header
      _
    $region3: #{tpu_custom_call.1} parent=1 // loop_header
      %s24 = sphi 0, %s28
      %p25 = scmp.ge.s32.totalorder %s24, 4
      %s31 = sphi 0, %s43
      %s32 = sphi 0, %s39
      %s33 = sphi 0, %s31
      %s34 = sphi 0, %s32
      %s35 = sphi 0, %s33
      %s36 = sphi 0, %s34
      %s46 = sphi 0, %s48
      %s49 = sphi 0, %s46
      %s50 = sphi 0, %s49
      %s66 = sphi 0, %s50
      %s70 = sphi 0, %s70
      %s72 = sphi 0, %s70
      %s73 = sphi 0, %s72
      %s87 = sphi 0, %s73
      %s91 = sphi 0, %s91
      %s93 = sphi 0, %s91
      %s94 = sphi 0, %s93
      %s108 = sphi 0, %s94
      %s112 = sphi 0, %s112
      %s114 = sphi 0, %s112
      %s115 = sphi 0, %s114
      %s129 = sphi 0, %s115
      %s133 = sphi 0, %s133
      %s135 = sphi 0, %s133
      %s136 = sphi 0, %s135
      %s150 = sphi 0, %s136
      %s154 = sphi 0, %s154
      %s156 = sphi 0, %s154
      %s157 = sphi 0, %s156
      %s171 = sphi 0, %s157
      %s175 = sphi 0, %s175
      %s177 = sphi 0, %s175
      %s178 = sphi 0, %s177
      %s192 = sphi 0, %s178
      %s196 = sphi 0, %s196
      %s198 = sphi 0, %s196
      %s199 = sphi 0, %s198
      %s213 = sphi 0, %s199
      %s217 = sphi 0, %s217
      %s219 = sphi 0, %s217
      %s220 = sphi 0, %s219
      %s234 = sphi 0, %s220
      %s240 = sphi 0, %s242
      %s243 = sphi 0, %s240
      %s244 = sphi 0, %s243
      %s260 = sphi 0, %s244
      %s266 = sphi 0, %s268
      %s269 = sphi 0, %s266
      %s270 = sphi 0, %s269
      %s286 = sphi 0, %s270
      %s292 = sphi 0, %s294
      %s295 = sphi 0, %s292
      %s296 = sphi 0, %s295
      %s312 = sphi 0, %s296
      %s316 = sphi 0, %s316
      %s318 = sphi 0, %s316
      %s319 = sphi 0, %s318
      %s333 = sphi 0, %s319
      %s339 = sphi 0, %s341
      %s342 = sphi 0, %s339
      %s343 = sphi 0, %s342
      %s359 = sphi 0, %s343
      %s365 = sphi 0, %s367
      %s368 = sphi 0, %s365
      %s369 = sphi 0, %s368
      %s385 = sphi 0, %s369
      %s391 = sphi 0, %s393
      %s394 = sphi 0, %s391
      %s395 = sphi 0, %s394
      %s411 = sphi 0, %s395
    $region4: #{tpu_custom_call.1} parent=1 // loop_header_branch
      %27 = sbr.rel (%p25) target = $region8
    $region5: #{tpu_custom_call.1} parent=1 // loop_body
      %s29 = ssub.s32 %s24, 1
      %s30 = ssub.s32 %s24, 2
      %s37 = sadd.s32 1, %s32
      %p38 = scmp.ge.s32.totalorder %s37, 2
      %s39 = scalar_select %p38, 0, %s37
      %s40 = sadd.s32 1, %s31
      %s41 = scalar_select %p38, %s40, %s31
      %p42 = scmp.ge.s32.totalorder %s41, 1
      %s43 = scalar_select %p42, 0, %s41
      %s44 = ssub.s32 %s31, %s43
      %p45 = scmp.eq.s32.totalorder %s44, 0
      %s47 = sadd.s32 %s46, 1
      %s48 = scalar_select %p45, %s46, %s47
      %p51 = pneg %p45
      %p52 = scmp.eq.s32.totalorder %s24, 1
      %p53 = por %p51, %p52
      %p54 = scmp.ne.s32.totalorder %s46, %s49
      %p55 = scmp.eq.s32.totalorder %s24, 0
      %p56 = por %p54, %p55
      %p57 = scmp.ne.s32.totalorder %s46, %s49
      %p58 = scmp.eq.s32.totalorder %s29, 1
      %p59 = por %p57, %p58
      %p60 = scmp.ne.s32.totalorder %s49, %s50
      %p61 = scmp.eq.s32.totalorder %s29, 0
      %p62 = por %p60, %p61
      %p63 = scmp.ne.s32.totalorder %s49, %s50
      %p64 = scmp.eq.s32.totalorder %s30, 1
      %p65 = por %p63, %p64
      %p67 = scmp.ne.s32.totalorder %s50, %s66
      %p68 = scmp.eq.s32.totalorder %s30, 0
      %p69 = por %p67, %p68
      %s71 = sadd.s32 %s70, 1
      %p74 = scmp.eq.s32.totalorder %s24, 1
      %p75 = scmp.ne.s32.totalorder %s70, %s72
      %p76 = scmp.eq.s32.totalorder %s24, 0
      %p77 = por %p75, %p76
      %p78 = scmp.ne.s32.totalorder %s70, %s72
      %p79 = scmp.eq.s32.totalorder %s29, 1
      %p80 = por %p78, %p79
      %p81 = scmp.ne.s32.totalorder %s72, %s73
      %p82 = scmp.eq.s32.totalorder %s29, 0
      %p83 = por %p81, %p82
      %p84 = scmp.ne.s32.totalorder %s72, %s73
      %p85 = scmp.eq.s32.totalorder %s30, 1
      %p86 = por %p84, %p85
      %p88 = scmp.ne.s32.totalorder %s73, %s87
      %p89 = scmp.eq.s32.totalorder %s30, 0
      %p90 = por %p88, %p89
      %s92 = sadd.s32 %s91, 1
      %p95 = scmp.eq.s32.totalorder %s24, 1
      %p96 = scmp.ne.s32.totalorder %s91, %s93
      %p97 = scmp.eq.s32.totalorder %s24, 0
      %p98 = por %p96, %p97
      %p99 = scmp.ne.s32.totalorder %s91, %s93
      %p100 = scmp.eq.s32.totalorder %s29, 1
      %p101 = por %p99, %p100
      %p102 = scmp.ne.s32.totalorder %s93, %s94
      %p103 = scmp.eq.s32.totalorder %s29, 0
      %p104 = por %p102, %p103
      %p105 = scmp.ne.s32.totalorder %s93, %s94
      %p106 = scmp.eq.s32.totalorder %s30, 1
      %p107 = por %p105, %p106
      %p109 = scmp.ne.s32.totalorder %s94, %s108
      %p110 = scmp.eq.s32.totalorder %s30, 0
      %p111 = por %p109, %p110
      %s113 = sadd.s32 %s112, 1
      %p116 = scmp.eq.s32.totalorder %s24, 1
      %p117 = scmp.ne.s32.totalorder %s112, %s114
      %p118 = scmp.eq.s32.totalorder %s24, 0
      %p119 = por %p117, %p118
      %p120 = scmp.ne.s32.totalorder %s112, %s114
      %p121 = scmp.eq.s32.totalorder %s29, 1
      %p122 = por %p120, %p121
      %p123 = scmp.ne.s32.totalorder %s114, %s115
      %p124 = scmp.eq.s32.totalorder %s29, 0
      %p125 = por %p123, %p124
      %p126 = scmp.ne.s32.totalorder %s114, %s115
      %p127 = scmp.eq.s32.totalorder %s30, 1
      %p128 = por %p126, %p127
      %p130 = scmp.ne.s32.totalorder %s115, %s129
      %p131 = scmp.eq.s32.totalorder %s30, 0
      %p132 = por %p130, %p131
      %s134 = sadd.s32 %s133, 1
      %p137 = scmp.eq.s32.totalorder %s24, 1
      %p138 = scmp.ne.s32.totalorder %s133, %s135
      %p139 = scmp.eq.s32.totalorder %s24, 0
      %p140 = por %p138, %p139
      %p141 = scmp.ne.s32.totalorder %s133, %s135
      %p142 = scmp.eq.s32.totalorder %s29, 1
      %p143 = por %p141, %p142
      %p144 = scmp.ne.s32.totalorder %s135, %s136
      %p145 = scmp.eq.s32.totalorder %s29, 0
      %p146 = por %p144, %p145
      %p147 = scmp.ne.s32.totalorder %s135, %s136
      %p148 = scmp.eq.s32.totalorder %s30, 1
      %p149 = por %p147, %p148
      %p151 = scmp.ne.s32.totalorder %s136, %s150
      %p152 = scmp.eq.s32.totalorder %s30, 0
      %p153 = por %p151, %p152
      %s155 = sadd.s32 %s154, 1
      %p158 = scmp.eq.s32.totalorder %s24, 1
      %p159 = scmp.ne.s32.totalorder %s154, %s156
      %p160 = scmp.eq.s32.totalorder %s24, 0
      %p161 = por %p159, %p160
      %p162 = scmp.ne.s32.totalorder %s154, %s156
      %p163 = scmp.eq.s32.totalorder %s29, 1
      %p164 = por %p162, %p163
      %p165 = scmp.ne.s32.totalorder %s156, %s157
      %p166 = scmp.eq.s32.totalorder %s29, 0
      %p167 = por %p165, %p166
      %p168 = scmp.ne.s32.totalorder %s156, %s157
      %p169 = scmp.eq.s32.totalorder %s30, 1
      %p170 = por %p168, %p169
      %p172 = scmp.ne.s32.totalorder %s157, %s171
      %p173 = scmp.eq.s32.totalorder %s30, 0
      %p174 = por %p172, %p173
      %s176 = sadd.s32 %s175, 1
      %p179 = scmp.eq.s32.totalorder %s24, 1
      %p180 = scmp.ne.s32.totalorder %s175, %s177
      %p181 = scmp.eq.s32.totalorder %s24, 0
      %p182 = por %p180, %p181
      %p183 = scmp.ne.s32.totalorder %s175, %s177
      %p184 = scmp.eq.s32.totalorder %s29, 1
      %p185 = por %p183, %p184
      %p186 = scmp.ne.s32.totalorder %s177, %s178
      %p187 = scmp.eq.s32.totalorder %s29, 0
      %p188 = por %p186, %p187
      %p189 = scmp.ne.s32.totalorder %s177, %s178
      %p190 = scmp.eq.s32.totalorder %s30, 1
      %p191 = por %p189, %p190
      %p193 = scmp.ne.s32.totalorder %s178, %s192
      %p194 = scmp.eq.s32.totalorder %s30, 0
      %p195 = por %p193, %p194
      %s197 = sadd.s32 %s196, 1
      %p200 = scmp.eq.s32.totalorder %s24, 1
      %p201 = scmp.ne.s32.totalorder %s196, %s198
      %p202 = scmp.eq.s32.totalorder %s24, 0
      %p203 = por %p201, %p202
      %p204 = scmp.ne.s32.totalorder %s196, %s198
      %p205 = scmp.eq.s32.totalorder %s29, 1
      %p206 = por %p204, %p205
      %p207 = scmp.ne.s32.totalorder %s198, %s199
      %p208 = scmp.eq.s32.totalorder %s29, 0
      %p209 = por %p207, %p208
      %p210 = scmp.ne.s32.totalorder %s198, %s199
      %p211 = scmp.eq.s32.totalorder %s30, 1
      %p212 = por %p210, %p211
      %p214 = scmp.ne.s32.totalorder %s199, %s213
      %p215 = scmp.eq.s32.totalorder %s30, 0
      %p216 = por %p214, %p215
      %s218 = sadd.s32 %s217, 1
      %p221 = scmp.eq.s32.totalorder %s24, 1
      %p222 = scmp.ne.s32.totalorder %s217, %s219
      %p223 = scmp.eq.s32.totalorder %s24, 0
      %p224 = por %p222, %p223
      %p225 = scmp.ne.s32.totalorder %s217, %s219
      %p226 = scmp.eq.s32.totalorder %s29, 1
      %p227 = por %p225, %p226
      %p228 = scmp.ne.s32.totalorder %s219, %s220
      %p229 = scmp.eq.s32.totalorder %s29, 0
      %p230 = por %p228, %p229
      %p231 = scmp.ne.s32.totalorder %s219, %s220
      %p232 = scmp.eq.s32.totalorder %s30, 1
      %p233 = por %p231, %p232
      %p235 = scmp.ne.s32.totalorder %s220, %s234
      %p236 = scmp.eq.s32.totalorder %s30, 0
      %p237 = por %p235, %p236
      %s238 = ssub.s32 %s32, %s39
      %p239 = scmp.eq.s32.totalorder %s238, 0
      %s241 = sadd.s32 %s240, 1
      %s242 = scalar_select %p239, %s240, %s241
      %p245 = pneg %p239
      %p246 = scmp.eq.s32.totalorder %s24, 1
      %p247 = por %p245, %p246
      %p248 = scmp.ne.s32.totalorder %s240, %s243
      %p249 = scmp.eq.s32.totalorder %s24, 0
      %p250 = por %p248, %p249
      %p251 = scmp.ne.s32.totalorder %s240, %s243
      %p252 = scmp.eq.s32.totalorder %s29, 1
      %p253 = por %p251, %p252
      %p254 = scmp.ne.s32.totalorder %s243, %s244
      %p255 = scmp.eq.s32.totalorder %s29, 0
      %p256 = por %p254, %p255
      %p257 = scmp.ne.s32.totalorder %s243, %s244
      %p258 = scmp.eq.s32.totalorder %s30, 1
      %p259 = por %p257, %p258
      %p261 = scmp.ne.s32.totalorder %s244, %s260
      %p262 = scmp.eq.s32.totalorder %s30, 0
      %p263 = por %p261, %p262
      %s264 = ssub.s32 %s32, %s39
      %p265 = scmp.eq.s32.totalorder %s264, 0
      %s267 = sadd.s32 %s266, 1
      %s268 = scalar_select %p265, %s266, %s267
      %p271 = pneg %p265
      %p272 = scmp.eq.s32.totalorder %s24, 1
      %p273 = por %p271, %p272
      %p274 = scmp.ne.s32.totalorder %s266, %s269
      %p275 = scmp.eq.s32.totalorder %s24, 0
      %p276 = por %p274, %p275
      %p277 = scmp.ne.s32.totalorder %s266, %s269
      %p278 = scmp.eq.s32.totalorder %s29, 1
      %p279 = por %p277, %p278
      %p280 = scmp.ne.s32.totalorder %s269, %s270
      %p281 = scmp.eq.s32.totalorder %s29, 0
      %p282 = por %p280, %p281
      %p283 = scmp.ne.s32.totalorder %s269, %s270
      %p284 = scmp.eq.s32.totalorder %s30, 1
      %p285 = por %p283, %p284
      %p287 = scmp.ne.s32.totalorder %s270, %s286
      %p288 = scmp.eq.s32.totalorder %s30, 0
      %p289 = por %p287, %p288
      %s290 = ssub.s32 %s32, %s39
      %p291 = scmp.eq.s32.totalorder %s290, 0
      %s293 = sadd.s32 %s292, 1
      %s294 = scalar_select %p291, %s292, %s293
      %p297 = pneg %p291
      %p298 = scmp.eq.s32.totalorder %s24, 1
      %p299 = por %p297, %p298
      %p300 = scmp.ne.s32.totalorder %s292, %s295
      %p301 = scmp.eq.s32.totalorder %s24, 0
      %p302 = por %p300, %p301
      %p303 = scmp.ne.s32.totalorder %s292, %s295
      %p304 = scmp.eq.s32.totalorder %s29, 1
      %p305 = por %p303, %p304
      %p306 = scmp.ne.s32.totalorder %s295, %s296
      %p307 = scmp.eq.s32.totalorder %s29, 0
      %p308 = por %p306, %p307
      %p309 = scmp.ne.s32.totalorder %s295, %s296
      %p310 = scmp.eq.s32.totalorder %s30, 1
      %p311 = por %p309, %p310
      %p313 = scmp.ne.s32.totalorder %s296, %s312
      %p314 = scmp.eq.s32.totalorder %s30, 0
      %p315 = por %p313, %p314
      %s317 = sadd.s32 %s316, 1
      %p320 = scmp.eq.s32.totalorder %s24, 1
      %p321 = scmp.ne.s32.totalorder %s316, %s318
      %p322 = scmp.eq.s32.totalorder %s24, 0
      %p323 = por %p321, %p322
      %p324 = scmp.ne.s32.totalorder %s316, %s318
      %p325 = scmp.eq.s32.totalorder %s29, 1
      %p326 = por %p324, %p325
      %p327 = scmp.ne.s32.totalorder %s318, %s319
      %p328 = scmp.eq.s32.totalorder %s29, 0
      %p329 = por %p327, %p328
      %p330 = scmp.ne.s32.totalorder %s318, %s319
      %p331 = scmp.eq.s32.totalorder %s30, 1
      %p332 = por %p330, %p331
      %p334 = scmp.ne.s32.totalorder %s319, %s333
      %p335 = scmp.eq.s32.totalorder %s30, 0
      %p336 = por %p334, %p335
      %s337 = ssub.s32 %s31, %s43
      %p338 = scmp.eq.s32.totalorder %s337, 0
      %s340 = sadd.s32 %s339, 1
      %s341 = scalar_select %p338, %s339, %s340
      %p344 = pneg %p338
      %p345 = scmp.eq.s32.totalorder %s24, 1
      %p346 = por %p344, %p345
      %p347 = scmp.ne.s32.totalorder %s339, %s342
      %p348 = scmp.eq.s32.totalorder %s24, 0
      %p349 = por %p347, %p348
      %p350 = scmp.ne.s32.totalorder %s339, %s342
      %p351 = scmp.eq.s32.totalorder %s29, 1
      %p352 = por %p350, %p351
      %p353 = scmp.ne.s32.totalorder %s342, %s343
      %p354 = scmp.eq.s32.totalorder %s29, 0
      %p355 = por %p353, %p354
      %p356 = scmp.ne.s32.totalorder %s342, %s343
      %p357 = scmp.eq.s32.totalorder %s30, 1
      %p358 = por %p356, %p357
      %p360 = scmp.ne.s32.totalorder %s343, %s359
      %p361 = scmp.eq.s32.totalorder %s30, 0
      %p362 = por %p360, %p361
      %s363 = ssub.s32 %s31, %s43
      %p364 = scmp.eq.s32.totalorder %s363, 0
      %s366 = sadd.s32 %s365, 1
      %s367 = scalar_select %p364, %s365, %s366
      %p370 = pneg %p364
      %p371 = scmp.eq.s32.totalorder %s24, 1
      %p372 = por %p370, %p371
      %p373 = scmp.ne.s32.totalorder %s365, %s368
      %p374 = scmp.eq.s32.totalorder %s24, 0
      %p375 = por %p373, %p374
      %p376 = scmp.ne.s32.totalorder %s365, %s368
      %p377 = scmp.eq.s32.totalorder %s29, 1
      %p378 = por %p376, %p377
      %p379 = scmp.ne.s32.totalorder %s368, %s369
      %p380 = scmp.eq.s32.totalorder %s29, 0
      %p381 = por %p379, %p380
      %p382 = scmp.ne.s32.totalorder %s368, %s369
      %p383 = scmp.eq.s32.totalorder %s30, 1
      %p384 = por %p382, %p383
      %p386 = scmp.ne.s32.totalorder %s369, %s385
      %p387 = scmp.eq.s32.totalorder %s30, 0
      %p388 = por %p386, %p387
      %s389 = ssub.s32 %s31, %s43
      %p390 = scmp.eq.s32.totalorder %s389, 0
      %s392 = sadd.s32 %s391, 1
      %s393 = scalar_select %p390, %s391, %s392
      %p396 = pneg %p390
      %p397 = scmp.eq.s32.totalorder %s24, 1
      %p398 = por %p396, %p397
      %p399 = scmp.ne.s32.totalorder %s391, %s394
      %p400 = scmp.eq.s32.totalorder %s24, 0
      %p401 = por %p399, %p400
      %p402 = scmp.ne.s32.totalorder %s391, %s394
      %p403 = scmp.eq.s32.totalorder %s29, 1
      %p404 = por %p402, %p403
      %p405 = scmp.ne.s32.totalorder %s394, %s395
      %p406 = scmp.eq.s32.totalorder %s29, 0
      %p407 = por %p405, %p406
      %p408 = scmp.ne.s32.totalorder %s394, %s395
      %p409 = scmp.eq.s32.totalorder %s30, 1
      %p410 = por %p408, %p409
      %p412 = scmp.ne.s32.totalorder %s395, %s411
      %p413 = scmp.eq.s32.totalorder %s30, 0
      %p414 = por %p412, %p413
      %p415 = scmp.le.s32.totalorder 1, %s24
      %p416 = scmp.lt.s32.totalorder %s24, 3
      %p417 = pnand %p415, %p416
      %p418 = pneg %p417
      // Predicated region
      $region9: #{tpu_custom_call.1} parent=5 // pred_check
        _
      $region10: #{tpu_custom_call.1} parent=5 // pred_check_branch
        %420 = sbr.rel (%p417) target = $region12
      $region11: #{tpu_custom_call.1} parent=5 // pred_region
        %s421 = ssub.s32 %s24, 1
        // Predicated region
        $region13: #{tpu_custom_call.1} parent=11 // pred_check
          %p422 = pneg %p62
        $region14: #{tpu_custom_call.1} parent=11 // pred_check_branch
          %424 = sbr.rel (%p422) target = $region16
        $region15: #{tpu_custom_call.1} parent=11 // pred_region
          %s425 = smul.u32 2, %s33
          %p426 = scmp.lt.s32.totalorder %s425, 1
          %s427 = scalar_select %p426, %s425, 1
          %s428 = smul.addr %s427, 8
          %s429 = scalar_lea.vmem %s0, %s428
          %s430 = smul.u32 2, %s33
        $region16: #{tpu_custom_call.1} parent=11 // pred_fallthru
          _
        // Predicated region
        $region17: #{tpu_custom_call.1} parent=11 // pred_check
          %p431 = pneg %p83
        $region18: #{tpu_custom_call.1} parent=11 // pred_check_branch
          %433 = sbr.rel (%p431) target = $region20
        $region19: #{tpu_custom_call.1} parent=11 // pred_region
          _
        $region20: #{tpu_custom_call.1} parent=11 // pred_fallthru
          _
        // Predicated region
        $region21: #{tpu_custom_call.1} parent=11 // pred_check
          %p434 = pneg %p104
        $region22: #{tpu_custom_call.1} parent=11 // pred_check_branch
          %436 = sbr.rel (%p434) target = $region24
        $region23: #{tpu_custom_call.1} parent=11 // pred_region
          _
        $region24: #{tpu_custom_call.1} parent=11 // pred_fallthru
          _
        // Predicated region
        $region25: #{tpu_custom_call.1} parent=11 // pred_check
          %p437 = pneg %p125
        $region26: #{tpu_custom_call.1} parent=11 // pred_check_branch
          %439 = sbr.rel (%p437) target = $region28
        $region27: #{tpu_custom_call.1} parent=11 // pred_region
          _
        $region28: #{tpu_custom_call.1} parent=11 // pred_fallthru
          _
        // Predicated region
        $region29: #{tpu_custom_call.1} parent=11 // pred_check
          %p440 = pneg %p146
        $region30: #{tpu_custom_call.1} parent=11 // pred_check_branch
          %442 = sbr.rel (%p440) target = $region32
        $region31: #{tpu_custom_call.1} parent=11 // pred_region
          _
        $region32: #{tpu_custom_call.1} parent=11 // pred_fallthru
          _
        // Predicated region
        $region33: #{tpu_custom_call.1} parent=11 // pred_check
          %p443 = pneg %p167
        $region34: #{tpu_custom_call.1} parent=11 // pred_check_branch
          %445 = sbr.rel (%p443) target = $region36
        $region35: #{tpu_custom_call.1} parent=11 // pred_region
          _
        $region36: #{tpu_custom_call.1} parent=11 // pred_fallthru
          _
        // Predicated region
        $region37: #{tpu_custom_call.1} parent=11 // pred_check
          %p446 = pneg %p188
        $region38: #{tpu_custom_call.1} parent=11 // pred_check_branch
          %448 = sbr.rel (%p446) target = $region40
        $region39: #{tpu_custom_call.1} parent=11 // pred_region
          _
        $region40: #{tpu_custom_call.1} parent=11 // pred_fallthru
          _
        // Predicated region
        $region41: #{tpu_custom_call.1} parent=11 // pred_check
          %p449 = pneg %p209
        $region42: #{tpu_custom_call.1} parent=11 // pred_check_branch
          %451 = sbr.rel (%p449) target = $region44
        $region43: #{tpu_custom_call.1} parent=11 // pred_region
          _
        $region44: #{tpu_custom_call.1} parent=11 // pred_fallthru
          _
        // Predicated region
        $region45: #{tpu_custom_call.1} parent=11 // pred_check
          %p452 = pneg %p230
        $region46: #{tpu_custom_call.1} parent=11 // pred_check_branch
          %454 = sbr.rel (%p452) target = $region48
        $region47: #{tpu_custom_call.1} parent=11 // pred_region
          _
        $region48: #{tpu_custom_call.1} parent=11 // pred_fallthru
          _
        // Predicated region
        $region49: #{tpu_custom_call.1} parent=11 // pred_check
          %p455 = pneg %p329
        $region50: #{tpu_custom_call.1} parent=11 // pred_check_branch
          %457 = sbr.rel (%p455) target = $region52
        $region51: #{tpu_custom_call.1} parent=11 // pred_region
          _
        $region52: #{tpu_custom_call.1} parent=11 // pred_fallthru
          _
      $region12: #{tpu_custom_call.1} parent=5 // pred_fallthru
        _
      %p458 = scmp.lt.s32.totalorder %s24, 2
      // Predicated region
      $region53: #{tpu_custom_call.1} parent=5 // pred_check
        %p459 = pneg %p458
      $region54: #{tpu_custom_call.1} parent=5 // pred_check_branch
        %461 = sbr.rel (%p459) target = $region56
      $region55: #{tpu_custom_call.1} parent=5 // pred_region
        // Predicated region
        $region57: #{tpu_custom_call.1} parent=55 // pred_check
          %p462 = pneg %p250
        $region58: #{tpu_custom_call.1} parent=55 // pred_check_branch
          %464 = sbr.rel (%p462) target = $region60
        $region59: #{tpu_custom_call.1} parent=55 // pred_region
          %s465 = sand.u32 %s240, 1
          %s466 = sand.u32 %s240, 1
          %s467 = smul.addr %s466, 16
          %s468 = scalar_lea.vmem [#allocation9], %s467
          %s469 = smul.addr %s32, 4
          %s470 = scalar_lea.vmem %s9, %s469
          // Predicated region
          $region61: #{tpu_custom_call.1} parent=59 // pred_check
            _
          $region62: #{tpu_custom_call.1} parent=59 // pred_check_branch
            %472 = sbr.rel (0) target = $region64
          $region63: #{tpu_custom_call.1} parent=59 // pred_region
            // Predicated region
            $region65: #{tpu_custom_call.1} parent=63 // pred_check
              _
            $region66: #{tpu_custom_call.1} parent=63 // pred_check_branch
              %474 = sbr.rel target = $region68
            $region67: #{tpu_custom_call.1} parent=63 // pred_region
              // Predicated region
              $region80: #{tpu_custom_call.1} parent=67 // pred_check
                _
              $region81: #{tpu_custom_call.1} parent=67 // pred_check_branch
                %496 = sbr.rel (0) target = $region83
              $region82: #{tpu_custom_call.1} parent=67 // pred_region
                loop: start=0, step=1, limit=1
                $region84: #{tpu_custom_call.1} parent=82 // loop_pre_header
                  _
                $region85: #{tpu_custom_call.1} parent=82 // loop_header
                  %s498 = sphi 0, %s502
                  %p499 = scmp.ge.s32.totalorder %s498, 1
                  %s503 = sphi %s470, %s470
                  %s504 = sphi %s468, %s468
                $region86: #{tpu_custom_call.1} parent=82 // loop_header_branch
                  %501 = sbr.rel (%p499) target = $region90
                $region87: #{tpu_custom_call.1} parent=82 // loop_body
                  _
                $region88: #{tpu_custom_call.1} parent=82 // loop_footer
                  %s502 = sadd.s32 1, %s498
                $region89: #{tpu_custom_call.1} parent=82 // loop_footer_branch
                  %497 = sbr.rel target = $region85
                $region90: #{tpu_custom_call.1} parent=82 // loop_exit
                  _
                %s506 = ssub.s32 16, 1
                loop: start=0, step=1, limit=1
                $region91: #{tpu_custom_call.1} parent=82 // loop_pre_header
                  _
                $region92: #{tpu_custom_call.1} parent=82 // loop_header
                  %s508 = sphi 0, %s512
                  %p509 = scmp.ge.s32.totalorder %s508, 1
                  %s513 = sphi %s470, %s470
                  %s514 = sphi %s468, %s468
                $region93: #{tpu_custom_call.1} parent=82 // loop_header_branch
                  %511 = sbr.rel (%p509) target = $region97
                $region94: #{tpu_custom_call.1} parent=82 // loop_body
                  %v515 = vld [vmem:[%s513] sm:%s506]
                  %516 = vst [vmem:[%s514] sm:%s506] %v515
                  %v517 = vld [vmem:[%s513 + $0x8] sm:%s506]
                  %518 = vst [vmem:[%s514 + $0x4] sm:%s506] %v517
                  %v519 = vld [vmem:[%s513 + $0x10] sm:%s506]
                  %520 = vst [vmem:[%s514 + $0x8] sm:%s506] %v519
                  %v521 = vld [vmem:[%s513 + $0x18] sm:%s506]
                  %522 = vst [vmem:[%s514 + $0xc] sm:%s506] %v521
                $region95: #{tpu_custom_call.1} parent=82 // loop_footer
                  %s512 = sadd.s32 1, %s508
                $region96: #{tpu_custom_call.1} parent=82 // loop_footer_branch
                  %507 = sbr.rel target = $region92
                $region97: #{tpu_custom_call.1} parent=82 // loop_exit
                  _
              $region83: #{tpu_custom_call.1} parent=67 // pred_fallthru
                _
            $region68: #{tpu_custom_call.1} parent=63 // pred_fallthru
              _
            // Predicated region
            $region69: #{tpu_custom_call.1} parent=63 // pred_check
              _
            $region70: #{tpu_custom_call.1} parent=63 // pred_check_branch
              %476 = sbr.rel (0) target = $region72
            $region71: #{tpu_custom_call.1} parent=63 // pred_region
              %s478 = ssub.s32 16, 1
              loop: start=0, step=1, limit=1
              $region73: #{tpu_custom_call.1} parent=71 // loop_pre_header
                _
              $region74: #{tpu_custom_call.1} parent=71 // loop_header
                %s480 = sphi 0, %s484
                %p481 = scmp.ge.s32.totalorder %s480, 1
                %s485 = sphi %s470, %s470
                %s486 = sphi %s468, %s468
              $region75: #{tpu_custom_call.1} parent=71 // loop_header_branch
                %483 = sbr.rel (%p481) target = $region79
              $region76: #{tpu_custom_call.1} parent=71 // loop_body
                %v487 = vld [vmem:[%s485] sm:%s478]
                %488 = vst [vmem:[%s486] sm:%s478] %v487
                %v489 = vld [vmem:[%s485 + $0x8] sm:%s478]
                %490 = vst [vmem:[%s486 + $0x4] sm:%s478] %v489
                %v491 = vld [vmem:[%s485 + $0x10] sm:%s478]
                %492 = vst [vmem:[%s486 + $0x8] sm:%s478] %v491
                %v493 = vld [vmem:[%s485 + $0x18] sm:%s478]
                %494 = vst [vmem:[%s486 + $0xc] sm:%s478] %v493
              $region77: #{tpu_custom_call.1} parent=71 // loop_footer
                %s484 = sadd.s32 1, %s480
              $region78: #{tpu_custom_call.1} parent=71 // loop_footer_branch
                %479 = sbr.rel target = $region74
              $region79: #{tpu_custom_call.1} parent=71 // loop_exit
                _
            $region72: #{tpu_custom_call.1} parent=63 // pred_fallthru
              _
          $region64: #{tpu_custom_call.1} parent=59 // pred_fallthru
            _
          %523 = vnop
        $region60: #{tpu_custom_call.1} parent=55 // pred_fallthru
          _
        // Predicated region
        $region98: #{tpu_custom_call.1} parent=55 // pred_check
          %p524 = pneg %p276
        $region99: #{tpu_custom_call.1} parent=55 // pred_check_branch
          %526 = sbr.rel (%p524) target = $region101
        $region100: #{tpu_custom_call.1} parent=55 // pred_region
          %p527 = scmp.lt.s32.totalorder %s32, 1
          %s528 = scalar_select %p527, %s32, 1
          %s529 = scalar_lea.vmem %s10, %s528
        $region101: #{tpu_custom_call.1} parent=55 // pred_fallthru
          _
        // Predicated region
        $region102: #{tpu_custom_call.1} parent=55 // pred_check
          %p530 = pneg %p302
        $region103: #{tpu_custom_call.1} parent=55 // pred_check_branch
          %532 = sbr.rel (%p530) target = $region105
        $region104: #{tpu_custom_call.1} parent=55 // pred_region
          %s533 = smul.u32 16, %s32
          %p534 = scmp.lt.s32.totalorder %s533, 31
          %s535 = scalar_select %p534, %s533, 31
          %s536 = smul.addr %s535, 4
          %s537 = scalar_lea.vmem %s11, %s536
          %s538 = smul.u32 16, %s32
        $region105: #{tpu_custom_call.1} parent=55 // pred_fallthru
          _
      $region56: #{tpu_custom_call.1} parent=5 // pred_fallthru
        _
      %p539 = scmp.le.s32.totalorder 1, %s24
      %p540 = scmp.lt.s32.totalorder %s24, 3
      %p541 = pnand %p539, %p540
      %p542 = pneg %p541
      // Predicated region
      $region106: #{tpu_custom_call.1} parent=5 // pred_check
        _
      $region107: #{tpu_custom_call.1} parent=5 // pred_check_branch
        %544 = sbr.rel (%p541) target = $region109
      $region108: #{tpu_custom_call.1} parent=5 // pred_region
        %s545 = ssub.s32 %s24, 1
        %s546 = sand.u32 %s243, 1
        %s547 = sand.u32 %s243, 1
        %s548 = smul.addr %s547, 16
        %s549 = scalar_lea.vmem [#allocation9], %s548
        // Predicated region
        $region110: #{tpu_custom_call.1} parent=108 // pred_check
          %p550 = pneg %p256
        $region111: #{tpu_custom_call.1} parent=108 // pred_check_branch
          %552 = sbr.rel (%p550) target = $region113
        $region112: #{tpu_custom_call.1} parent=108 // pred_region
          _
        $region113: #{tpu_custom_call.1} parent=108 // pred_fallthru
          _
        %s553 = smul.u32 2, %s33
        %p554 = scmp.lt.s32.totalorder %s553, 1
        %s555 = scalar_select %p554, %s553, 1
        %s556 = smul.addr %s555, 8
        %s557 = scalar_lea.vmem %s0, %s556
        %p558 = pneg %p62
        %p559 = pneg %p59
        %p560 = pneg %p83
        %p561 = pneg %p80
        %p562 = pneg %p104
        %p563 = pneg %p101
        %p564 = pneg %p125
        %p565 = pneg %p122
        %p566 = pneg %p146
        %p567 = pneg %p143
        %p568 = pneg %p167
        %p569 = pneg %p164
        %p570 = pneg %p188
        %p571 = pneg %p185
        %p572 = pneg %p209
        %p573 = pneg %p206
        %p574 = pneg %p230
        %p575 = pneg %p227
        %s576 = sand.u32 %s243, 1
        %s577 = sand.u32 %s243, 1
        %s578 = smul.addr %s577, 16
        %s579 = scalar_lea.vmem [#allocation9], %s578
        %p580 = pneg %p256
        %p581 = pneg %p253
        %p582 = scmp.lt.s32.totalorder %s34, 1
        %s583 = scalar_select %p582, %s34, 1
        %s584 = scalar_lea.vmem %s10, %s583
        %p585 = pneg %p282
        %p586 = pneg %p279
        %s587 = smul.u32 16, %s34
        %p588 = scmp.lt.s32.totalorder %s587, 31
        %s589 = scalar_select %p588, %s587, 31
        %s590 = smul.addr %s589, 4
        %s591 = scalar_lea.vmem %s11, %s590
        %p592 = pneg %p308
        %p593 = pneg %p305
        %p594 = pneg %p329
        %p595 = pneg %p326
        %p596 = pneg %p355
        %p597 = pneg %p352
        %p598 = pneg %p381
        %p599 = pneg %p378
        %p600 = pneg %p407
        %p601 = pneg %p404
        %s602 = smul.u32 2, %s33
        %p603 = scmp.lt.s32.totalorder %s602, 1
        %s604 = scalar_select %p603, %s602, 1
        %s605 = smul.addr %s604, 8
        %s606 = scalar_lea.vmem %s0, %s605
        %s607 = smul.u32 2, %s33
        %p608 = scmp.lt.s32.totalorder %s34, 1
        %s609 = scalar_select %p608, %s34, 1
        %s610 = scalar_lea.vmem %s10, %s609
        %s611 = smul.u32 16, %s34
        %p612 = scmp.lt.s32.totalorder %s611, 31
        %s613 = scalar_select %p612, %s611, 31
        %s614 = smul.addr %s613, 4
        %s615 = scalar_lea.vmem %s11, %s614
        %s616 = smul.u32 16, %s34
        %s617 = smul.u32 2, %s33
        %s618 = smul.u32 2, %s33
        %s619 = smul.u32 2, %s33
        %p621 = scmp.eq.s32.totalorder %s34, 0
        // Predicated region
        $region114: #{tpu_custom_call.1} parent=108 // pred_check
          %p622 = pneg %p621
        $region115: #{tpu_custom_call.1} parent=108 // pred_check_branch
          %624 = sbr.rel (%p622) target = $region117
        $region116: #{tpu_custom_call.1} parent=108 // pred_region
          %v625 = vld [vmem:[%s606] sm:$0xff]
          %v626 = vld [vmem:[%s606 + $0x8] sm:$0xff]
          %v627 = vld [vmem:[%s1] sm:$0x1]
          %v628 = vld [vmem:[%s2] sm:$0x1]
          %vm629 = vcmask 261120
          %v630 = vsel %vm629, %v625, 0.0
          %631 = vadd.xlane.f32.xlu0 %v630
          %v632 = vpop.xlane.xlu0 %631
          %v633 = vsel %vm629, %v626, 0.0
          %634 = vadd.xlane.f32.xlu0 %v633
          %v635 = vpop.xlane.xlu0 %634
          %v636 = vrcp.pop 32.0
          %v637 = vmul.f32 %v632, %v636
          %v638 = vmul.f32 %v635, %v636
          %v639 = vsub.f32 %v625, %v637
          %v640 = vsub.f32 %v626, %v638
          %v641 = vmul.f32 %v639, %v639
          %v642 = vmul.f32 %v640, %v640
          %v643 = vsel %vm629, %v641, 0.0
          %644 = vadd.xlane.f32.xlu0 %v643
          %v645 = vpop.xlane.xlu0 %644
          %v646 = vsel %vm629, %v642, 0.0
          %647 = vadd.xlane.f32.xlu0 %v646
          %v648 = vpop.xlane.xlu0 %647
          %v649 = vmul.f32 %v645, %v636
          %v650 = vmul.f32 %v648, %v636
          %v651 = vadd.f32 %v649, 1e-06
          %v652 = vadd.f32 %v650, 1e-06
          %v653 = vrsqrt.pop %v651
          %v654 = vrsqrt.pop %v652
          %v655 = vmul.f32 %v639, %v653
          %v656 = vmul.f32 %v640, %v654
          %v658 = vlaneseq
          %v659 = vshrl.u32 %v658, 7
          %v660 = vsub.s32 0, %v659
          %v661 = vrot.slane %v627, %v660
          %v663 = vmul.f32 %v655, %v661
          %v664 = vmul.f32 %v656, %v661
          %v666 = vlaneseq
          %v667 = vshrl.u32 %v666, 7
          %v668 = vsub.s32 0, %v667
          %v669 = vrot.slane %v628, %v668
          %v671 = vadd.f32 %v663, %v669
          %v672 = vadd.f32 %v664, %v669
          %v673 = vpack.c.bf16 %v672, %v671
          %v674 = vld [vmem:[%s3] sm:$0xf]
          %v675 = vld [vmem:[%s3 + $0x4] sm:$0xf]
          %v676 = vld [vmem:[%s3 + $0x8] sm:$0xf]
          %v677 = vld [vmem:[%s3 + $0xc] sm:$0xf]
          %v678 = vld [vmem:[%s4] sm:$0x1]
          %v680 = vlaneseq
          %v681 = vshrl.u32 %v680, 7
          %v682 = vsub.s32 0, %v681
          %v683 = vrot.slane %v678, %v682
          %v689 = vunpack.c.l.b16 %v674
          %v690 = vunpack.c.l.b16 %v675
          %v691 = vunpack.c.l.b16 %v676
          %v692 = vunpack.c.l.b16 %v677
          %v693 = vpack.c.b16 %v690, %v689
          %v694 = vpack.c.b16 %v692, %v691
          %v698 = vsel %vm629, %v673, 0
          %700 = vmatprep.subr.bf16.mxu0 0
          %701 = vmatpush1.bf16.msra.mxu0 0
          %702 = vmatprep.subr.bf16.mxu0 0
          %703 = vmatpush1.bf16.msra.mxu0 0
          %704 = vmatprep.subr.bf16.mxu0 0
          %705 = vmatpush1.bf16.msra.mxu0 0
          %706 = vmatprep.subr.bf16.mxu0 0
          %707 = vmatpush1.bf16.msra.mxu0 0
          %708 = vmatprep.subr.bf16.mxu0 0
          %709 = vmatpush1.bf16.msra.mxu0 0
          %710 = vmatprep.subr.bf16.mxu0 0
          %711 = vmatpush1.bf16.msra.mxu0 0
          %712 = vmatprep.subr.bf16.mxu0 0
          %713 = vmatpush1.bf16.msra.mxu0 %v694
          %714 = vmatprep.subr.bf16.mxu0 0
          %715 = vmatpush1.bf16.msra.mxu0 %v693
          %716 = vmatprep.subr.bf16.mxu0 0
          %717 = vmatpush2.bf16.msra.mxu0 0
          %718 = vmatprep.subr.bf16.mxu0 0
          %719 = vmatpush2.bf16.msra.mxu0 0
          %720 = vmatprep.subr.bf16.mxu0 0
          %721 = vmatpush2.bf16.msra.mxu0 0
          %722 = vmatprep.subr.bf16.mxu0 0
          %723 = vmatpush2.bf16.msra.mxu0 0
          %724 = vmatprep.subr.bf16.mxu0 0
          %725 = vmatpush2.bf16.msra.mxu0 0
          %726 = vmatprep.subr.bf16.mxu0 0
          %727 = vmatpush2.bf16.msra.mxu0 0
          %728 = vmatprep.subr.bf16.mxu0 0
          %729 = vmatpush2.bf16.msra.mxu0 0
          %730 = vmatprep.subr.bf16.mxu0 0
          %731 = vmatpush2.bf16.msra.mxu0 0
          %732 = vmatprep.mubr.bf16.mxu0 0
          %733 = vmatmul.mubr.bf16.gmra.mxu0 %v698
          %v734 = vpop.f32.mrf.mxu0
          %v735 = vadd.f32 %v683, %v734
          %v736 = vpop.f32.mrf.mxu0
          %v737 = vpop.f32.mrf.mxu0
          %v738 = vadd.f32 %v683, %v737
          %v739 = vpop.f32.mrf.mxu0
          %740 = vdwg.mxu0
          %743 = vrot.lane.b32.xlu0 %v735, 96
          %v744 = vpop.permute.xlu0 %743
          %745 = vrot.lane.b32.xlu0 %v738, 96
          %v746 = vpop.permute.xlu0 %745
          %749 = vst.msk [vmem:[#allocation12] sm:$0xff] %vm629, %v744
          %750 = vst.msk [vmem:[#allocation12 + $0x8] sm:$0xff] %vm629, %v746
          %751 = vrot.lane.b32.xlu0 %v735, 64
          %v752 = vpop.permute.xlu0 %751
          %753 = vrot.lane.b32.xlu0 %v738, 64
          %v754 = vpop.permute.xlu0 %753
          %757 = vst.msk [vmem:[#allocation14] sm:$0xff] %vm629, %v752
          %758 = vst.msk [vmem:[#allocation14 + $0x8] sm:$0xff] %vm629, %v754
          %v759 = vpack.c.bf16 %v735, %v735
          %vm760 = vcmask 60416
          %761 = vst.msk [vmem:[#allocation2] sm:$0xf] %vm760, %v759
          %v763 = vunpack.c.l.b16 %v759
          %v764 = vpack.c.b16 %v763, %v763
          %765 = vrot.lane.b32.xlu0 %v764, 96
          %v766 = vpop.permute.xlu0 %765
          %768 = vst.msk [vmem:[#allocation3] sm:$0xf] %vm760, %v766
          %769 = vrot.lane.b32.xlu0 %v764, 64
          %v770 = vpop.permute.xlu0 %769
          %772 = vst.msk [vmem:[#allocation4] sm:$0xf] %vm760, %v770
          %773 = vrot.lane.b32.xlu0 %v764, 120
          %v774 = vpop.permute.xlu0 %773
          %s776 = scalar_lea.vmem [#allocation2], 4
          %777 = vst.msk [vmem:[%s776] sm:$0xf] %vm760, %v774
          %778 = vrot.lane.b32.xlu0 %v764, 88
          %v779 = vpop.permute.xlu0 %778
          %s781 = scalar_lea.vmem [#allocation3], 4
          %782 = vst.msk [vmem:[%s781] sm:$0xf] %vm760, %v779
          %783 = vrot.lane.b32.xlu0 %v764, 56
          %v784 = vpop.permute.xlu0 %783
          %s786 = scalar_lea.vmem [#allocation4], 4
          %787 = vst.msk [vmem:[%s786] sm:$0xf] %vm760, %v784
          %788 = vrot.lane.b32.xlu0 %v764, 112
          %v789 = vpop.permute.xlu0 %788
          %s791 = scalar_lea.vmem [#allocation2], 8
          %792 = vst.msk [vmem:[%s791] sm:$0xf] %vm760, %v789
          %793 = vrot.lane.b32.xlu0 %v764, 80
          %v794 = vpop.permute.xlu0 %793
          %s796 = scalar_lea.vmem [#allocation3], 8
          %797 = vst.msk [vmem:[%s796] sm:$0xf] %vm760, %v794
          %798 = vrot.lane.b32.xlu0 %v764, 48
          %v799 = vpop.permute.xlu0 %798
          %s801 = scalar_lea.vmem [#allocation4], 8
          %802 = vst.msk [vmem:[%s801] sm:$0xf] %vm760, %v799
          %803 = vrot.lane.b32.xlu0 %v764, 104
          %v804 = vpop.permute.xlu0 %803
          %s806 = scalar_lea.vmem [#allocation2], 12
          %807 = vst.msk [vmem:[%s806] sm:$0xf] %vm760, %v804
          %808 = vrot.lane.b32.xlu0 %v764, 72
          %v809 = vpop.permute.xlu0 %808
          %s811 = scalar_lea.vmem [#allocation3], 12
          %812 = vst.msk [vmem:[%s811] sm:$0xf] %vm760, %v809
          %813 = vrot.lane.b32.xlu0 %v764, 40
          %v814 = vpop.permute.xlu0 %813
          %s816 = scalar_lea.vmem [#allocation4], 12
          %817 = vst.msk [vmem:[%s816] sm:$0xf] %vm760, %v814
          %v818 = vpack.c.bf16 %v738, %v738
          %s819 = scalar_lea.vmem [#allocation2], 16
          %820 = vst.msk [vmem:[%s819] sm:$0xf] %vm760, %v818
          %v822 = vunpack.c.l.b16 %v818
          %v823 = vpack.c.b16 %v822, %v822
          %824 = vrot.lane.b32.xlu0 %v823, 96
          %v825 = vpop.permute.xlu0 %824
          %s827 = scalar_lea.vmem [#allocation3], 16
          %828 = vst.msk [vmem:[%s827] sm:$0xf] %vm760, %v825
          %829 = vrot.lane.b32.xlu0 %v823, 64
          %v830 = vpop.permute.xlu0 %829
          %s832 = scalar_lea.vmem [#allocation4], 16
          %833 = vst.msk [vmem:[%s832] sm:$0xf] %vm760, %v830
          %834 = vrot.lane.b32.xlu0 %v823, 120
          %v835 = vpop.permute.xlu0 %834
          %s837 = scalar_lea.vmem [#allocation2], 20
          %838 = vst.msk [vmem:[%s837] sm:$0xf] %vm760, %v835
          %839 = vrot.lane.b32.xlu0 %v823, 88
          %v840 = vpop.permute.xlu0 %839
          %s842 = scalar_lea.vmem [#allocation3], 20
          %843 = vst.msk [vmem:[%s842] sm:$0xf] %vm760, %v840
          %844 = vrot.lane.b32.xlu0 %v823, 56
          %v845 = vpop.permute.xlu0 %844
          %s847 = scalar_lea.vmem [#allocation4], 20
          %848 = vst.msk [vmem:[%s847] sm:$0xf] %vm760, %v845
          %849 = vrot.lane.b32.xlu0 %v823, 112
          %v850 = vpop.permute.xlu0 %849
          %s852 = scalar_lea.vmem [#allocation2], 24
          %853 = vst.msk [vmem:[%s852] sm:$0xf] %vm760, %v850
          %854 = vrot.lane.b32.xlu0 %v823, 80
          %v855 = vpop.permute.xlu0 %854
          %s857 = scalar_lea.vmem [#allocation3], 24
          %858 = vst.msk [vmem:[%s857] sm:$0xf] %vm760, %v855
          %859 = vrot.lane.b32.xlu0 %v823, 48
          %v860 = vpop.permute.xlu0 %859
          %s862 = scalar_lea.vmem [#allocation4], 24
          %863 = vst.msk [vmem:[%s862] sm:$0xf] %vm760, %v860
          %864 = vrot.lane.b32.xlu0 %v823, 104
          %v865 = vpop.permute.xlu0 %864
          %s867 = scalar_lea.vmem [#allocation2], 28
          %868 = vst.msk [vmem:[%s867] sm:$0xf] %vm760, %v865
          %869 = vrot.lane.b32.xlu0 %v823, 72
          %v870 = vpop.permute.xlu0 %869
          %s872 = scalar_lea.vmem [#allocation3], 28
          %873 = vst.msk [vmem:[%s872] sm:$0xf] %vm760, %v870
          %874 = vrot.lane.b32.xlu0 %v823, 40
          %v875 = vpop.permute.xlu0 %874
          %s877 = scalar_lea.vmem [#allocation4], 28
          %878 = vst.msk [vmem:[%s877] sm:$0xf] %vm760, %v875
          %v879 = vlaneseq
          %v880 = vshrl.u32 %v879, 7
          %v881 = vlaneseq
          %v882 = vand.u32 %v881, 127
          %vm883 = vcmp.gt.s32.totalorder %v882, %v880
          %v884 = vsel %vm883, -10000.0, 0.0
          loop: start=0, step=1, limit=2
          $region118: #{tpu_custom_call.1} parent=116 // loop_pre_header
            _
          $region119: #{tpu_custom_call.1} parent=116 // loop_header
            %s886 = sphi 0, %s890
            %p887 = scmp.ge.s32.totalorder %s886, 2
          $region120: #{tpu_custom_call.1} parent=116 // loop_header_branch
            %889 = sbr.rel (%p887) target = $region124
          $region121: #{tpu_custom_call.1} parent=116 // loop_body
            %s891 = smul.u32 %s886, 4
            %s892 = smul.addr %s891, 4
            %s893 = scalar_lea.vmem [#allocation2], %s892
            %v894 = vld [vmem:[%s893] sm:$0xf]
            %v895 = vld [vmem:[%s893 + $0x4] sm:$0xf]
            %v896 = vld [vmem:[%s893 + $0x8] sm:$0xf]
            %v897 = vld [vmem:[%s893 + $0xc] sm:$0xf]
            %s898 = smul.addr %s891, 4
            %s899 = scalar_lea.vmem [#allocation3], %s898
            %v900 = vld [vmem:[%s899] sm:$0xf]
            %v901 = vld [vmem:[%s899 + $0x4] sm:$0xf]
            %v902 = vld [vmem:[%s899 + $0x8] sm:$0xf]
            %v903 = vld [vmem:[%s899 + $0xc] sm:$0xf]
            %s904 = smul.addr %s891, 4
            %s905 = scalar_lea.vmem [#allocation4], %s904
            %v906 = vld [vmem:[%s905] sm:$0xf]
            %v907 = vld [vmem:[%s905 + $0x4] sm:$0xf]
            %v908 = vld [vmem:[%s905 + $0x8] sm:$0xf]
            %v909 = vld [vmem:[%s905 + $0xc] sm:$0xf]
            %vm910 = vcmask 64512
            %v912 = vsel %vm910, %v894, 0
            %v915 = vsel %vm910, %v900, 0
            %917 = vmatprep.subr.bf16.mxu0 0
            %918 = vmatpush1.bf16.xpose.msra.mxu0 0
            %919 = vmatprep.subr.bf16.mxu0 0
            %920 = vmatpush1.bf16.xpose.msra.mxu0 0
            %921 = vmatprep.subr.bf16.mxu0 0
            %922 = vmatpush1.bf16.xpose.msra.mxu0 0
            %923 = vmatprep.subr.bf16.mxu0 0
            %924 = vmatpush1.bf16.xpose.msra.mxu0 0
            %925 = vmatprep.subr.bf16.mxu0 0
            %926 = vmatpush1.bf16.xpose.msra.mxu0 0
            %927 = vmatprep.subr.bf16.mxu0 0
            %928 = vmatpush1.bf16.xpose.msra.mxu0 0
            %929 = vmatprep.subr.bf16.mxu0 0
            %930 = vmatpush1.bf16.xpose.msra.mxu0 0
            %931 = vmatprep.subr.bf16.mxu0 0
            %932 = vmatpush1.bf16.xpose.msra.mxu0 %v915
            %933 = vmatprep.subr.bf16.mxu0 0
            %934 = vmatpush2.bf16.xpose.msra.mxu0 0
            %935 = vmatprep.subr.bf16.mxu0 0
            %936 = vmatpush2.bf16.xpose.msra.mxu0 0
            %937 = vmatprep.subr.bf16.mxu0 0
            %938 = vmatpush2.bf16.xpose.msra.mxu0 0
            %939 = vmatprep.subr.bf16.mxu0 0
            %940 = vmatpush2.bf16.xpose.msra.mxu0 0
            %941 = vmatprep.subr.bf16.mxu0 0
            %942 = vmatpush2.bf16.xpose.msra.mxu0 0
            %943 = vmatprep.subr.bf16.mxu0 0
            %944 = vmatpush2.bf16.xpose.msra.mxu0 0
            %945 = vmatprep.subr.bf16.mxu0 0
            %946 = vmatpush2.bf16.xpose.msra.mxu0 0
            %947 = vmatprep.subr.bf16.mxu0 0
            %948 = vmatpush2.bf16.xpose.msra.mxu0 0
            %949 = vmatprep.mubr.bf16.mxu0 0
            %950 = vmatmul.mubr.bf16.gmra.mxu0 %v912
            %v951 = vpop.f32.mrf.mxu0
            %v952 = vadd.f32 %v884, %v951
            %v953 = vpop.f32.mrf.mxu0
            %v954 = vpop.f32.mrf.mxu0
            %v955 = vpop.f32.mrf.mxu0
            %956 = vdwg.mxu0
            %v958 = vsel %vm910, %v895, 0
            %v961 = vsel %vm910, %v901, 0
            %963 = vmatprep.subr.bf16.mxu0 0
            %964 = vmatpush1.bf16.xpose.msra.mxu0 0
            %965 = vmatprep.subr.bf16.mxu0 0
            %966 = vmatpush1.bf16.xpose.msra.mxu0 0
            %967 = vmatprep.subr.bf16.mxu0 0
            %968 = vmatpush1.bf16.xpose.msra.mxu0 0
            %969 = vmatprep.subr.bf16.mxu0 0
            %970 = vmatpush1.bf16.xpose.msra.mxu0 0
            %971 = vmatprep.subr.bf16.mxu0 0
            %972 = vmatpush1.bf16.xpose.msra.mxu0 0
            %973 = vmatprep.subr.bf16.mxu0 0
            %974 = vmatpush1.bf16.xpose.msra.mxu0 0
            %975 = vmatprep.subr.bf16.mxu0 0
            %976 = vmatpush1.bf16.xpose.msra.mxu0 0
            %977 = vmatprep.subr.bf16.mxu0 0
            %978 = vmatpush1.bf16.xpose.msra.mxu0 %v961
            %979 = vmatprep.subr.bf16.mxu0 0
            %980 = vmatpush2.bf16.xpose.msra.mxu0 0
            %981 = vmatprep.subr.bf16.mxu0 0
            %982 = vmatpush2.bf16.xpose.msra.mxu0 0
            %983 = vmatprep.subr.bf16.mxu0 0
            %984 = vmatpush2.bf16.xpose.msra.mxu0 0
            %985 = vmatprep.subr.bf16.mxu0 0
            %986 = vmatpush2.bf16.xpose.msra.mxu0 0
            %987 = vmatprep.subr.bf16.mxu0 0
            %988 = vmatpush2.bf16.xpose.msra.mxu0 0
            %989 = vmatprep.subr.bf16.mxu0 0
            %990 = vmatpush2.bf16.xpose.msra.mxu0 0
            %991 = vmatprep.subr.bf16.mxu0 0
            %992 = vmatpush2.bf16.xpose.msra.mxu0 0
            %993 = vmatprep.subr.bf16.mxu0 0
            %994 = vmatpush2.bf16.xpose.msra.mxu0 0
            %995 = vmatprep.mubr.bf16.mxu0 0
            %996 = vmatmul.mubr.bf16.gmra.mxu0 %v958
            %v997 = vpop.f32.mrf.mxu0
            %v998 = vadd.f32 %v884, %v997
            %v999 = vpop.f32.mrf.mxu0
            %v1000 = vpop.f32.mrf.mxu0
            %v1001 = vpop.f32.mrf.mxu0
            %1002 = vdwg.mxu0
            %v1004 = vsel %vm910, %v896, 0
            %v1007 = vsel %vm910, %v902, 0
            %1009 = vmatprep.subr.bf16.mxu0 0
            %1010 = vmatpush1.bf16.xpose.msra.mxu0 0
            %1011 = vmatprep.subr.bf16.mxu0 0
            %1012 = vmatpush1.bf16.xpose.msra.mxu0 0
            %1013 = vmatprep.subr.bf16.mxu0 0
            %1014 = vmatpush1.bf16.xpose.msra.mxu0 0
            %1015 = vmatprep.subr.bf16.mxu0 0
            %1016 = vmatpush1.bf16.xpose.msra.mxu0 0
            %1017 = vmatprep.subr.bf16.mxu0 0
            %1018 = vmatpush1.bf16.xpose.msra.mxu0 0
            %1019 = vmatprep.subr.bf16.mxu0 0
            %1020 = vmatpush1.bf16.xpose.msra.mxu0 0
            %1021 = vmatprep.subr.bf16.mxu0 0
            %1022 = vmatpush1.bf16.xpose.msra.mxu0 0
            %1023 = vmatprep.subr.bf16.mxu0 0
            %1024 = vmatpush1.bf16.xpose.msra.mxu0 %v1007
            %1025 = vmatprep.subr.bf16.mxu0 0
            %1026 = vmatpush2.bf16.xpose.msra.mxu0 0
            %1027 = vmatprep.subr.bf16.mxu0 0
            %1028 = vmatpush2.bf16.xpose.msra.mxu0 0
            %1029 = vmatprep.subr.bf16.mxu0 0
            %1030 = vmatpush2.bf16.xpose.msra.mxu0 0
            %1031 = vmatprep.subr.bf16.mxu0 0
            %1032 = vmatpush2.bf16.xpose.msra.mxu0 0
            %1033 = vmatprep.subr.bf16.mxu0 0
            %1034 = vmatpush2.bf16.xpose.msra.mxu0 0
            %1035 = vmatprep.subr.bf16.mxu0 0
            %1036 = vmatpush2.bf16.xpose.msra.mxu0 0
            %1037 = vmatprep.subr.bf16.mxu0 0
            %1038 = vmatpush2.bf16.xpose.msra.mxu0 0
            %1039 = vmatprep.subr.bf16.mxu0 0
            %1040 = vmatpush2.bf16.xpose.msra.mxu0 0
            %1041 = vmatprep.mubr.bf16.mxu0 0
            %1042 = vmatmul.mubr.bf16.gmra.mxu0 %v1004
            %v1043 = vpop.f32.mrf.mxu0
            %v1044 = vadd.f32 %v884, %v1043
            %v1045 = vpop.f32.mrf.mxu0
            %v1046 = vpop.f32.mrf.mxu0
            %v1047 = vpop.f32.mrf.mxu0
            %1048 = vdwg.mxu0
            %v1050 = vsel %vm910, %v897, 0
            %v1053 = vsel %vm910, %v903, 0
            %1055 = vmatprep.subr.bf16.mxu0 0
            %1056 = vmatpush1.bf16.xpose.msra.mxu0 0
            %1057 = vmatprep.subr.bf16.mxu0 0
            %1058 = vmatpush1.bf16.xpose.msra.mxu0 0
            %1059 = vmatprep.subr.bf16.mxu0 0
            %1060 = vmatpush1.bf16.xpose.msra.mxu0 0
            %1061 = vmatprep.subr.bf16.mxu0 0
            %1062 = vmatpush1.bf16.xpose.msra.mxu0 0
            %1063 = vmatprep.subr.bf16.mxu0 0
            %1064 = vmatpush1.bf16.xpose.msra.mxu0 0
            %1065 = vmatprep.subr.bf16.mxu0 0
            %1066 = vmatpush1.bf16.xpose.msra.mxu0 0
            %1067 = vmatprep.subr.bf16.mxu0 0
            %1068 = vmatpush1.bf16.xpose.msra.mxu0 0
            %1069 = vmatprep.subr.bf16.mxu0 0
            %1070 = vmatpush1.bf16.xpose.msra.mxu0 %v1053
            %1071 = vmatprep.subr.bf16.mxu0 0
            %1072 = vmatpush2.bf16.xpose.msra.mxu0 0
            %1073 = vmatprep.subr.bf16.mxu0 0
            %1074 = vmatpush2.bf16.xpose.msra.mxu0 0
            %1075 = vmatprep.subr.bf16.mxu0 0
            %1076 = vmatpush2.bf16.xpose.msra.mxu0 0
            %1077 = vmatprep.subr.bf16.mxu0 0
            %1078 = vmatpush2.bf16.xpose.msra.mxu0 0
            %1079 = vmatprep.subr.bf16.mxu0 0
            %1080 = vmatpush2.bf16.xpose.msra.mxu0 0
            %1081 = vmatprep.subr.bf16.mxu0 0
            %1082 = vmatpush2.bf16.xpose.msra.mxu0 0
            %1083 = vmatprep.subr.bf16.mxu0 0
            %1084 = vmatpush2.bf16.xpose.msra.mxu0 0
            %1085 = vmatprep.subr.bf16.mxu0 0
            %1086 = vmatpush2.bf16.xpose.msra.mxu0 0
            %1087 = vmatprep.mubr.bf16.mxu0 0
            %1088 = vmatmul.mubr.bf16.gmra.mxu0 %v1050
            %v1089 = vpop.f32.mrf.mxu0
            %v1090 = vadd.f32 %v884, %v1089
            %v1091 = vpop.f32.mrf.mxu0
            %v1092 = vpop.f32.mrf.mxu0
            %v1093 = vpop.f32.mrf.mxu0
            %1094 = vdwg.mxu0
            %v1095 = vsel %vm910, %v952, -inf
            %1096 = vmax.xlane.f32.xlu0 %v1095
            %v1097 = vpop.xlane.xlu0 %1096
            %v1098 = vsel %vm910, %v998, -inf
            %1099 = vmax.xlane.f32.xlu0 %v1098
            %v1100 = vpop.xlane.xlu0 %1099
            %v1101 = vsel %vm910, %v1044, -inf
            %1102 = vmax.xlane.f32.xlu0 %v1101
            %v1103 = vpop.xlane.xlu0 %1102
            %v1104 = vsel %vm910, %v1090, -inf
            %1105 = vmax.xlane.f32.xlu0 %v1104
            %v1106 = vpop.xlane.xlu0 %1105
            %v1107 = vsub.f32 %v952, %v1097
            %v1108 = vsub.f32 %v998, %v1100
            %v1109 = vsub.f32 %v1044, %v1103
            %v1110 = vsub.f32 %v1090, %v1106
            %v1111 = vmul.f32 %v1107, 1.442695
            %v1112 = vpow.pop %v1111
            %v1113 = vmul.f32 %v1108, 1.442695
            %v1114 = vpow.pop %v1113
            %v1115 = vmul.f32 %v1109, 1.442695
            %v1116 = vpow.pop %v1115
            %v1117 = vmul.f32 %v1110, 1.442695
            %v1118 = vpow.pop %v1117
            %v1119 = vsel %vm910, %v1112, 0.0
            %1120 = vadd.xlane.f32.xlu0 %v1119
            %v1121 = vpop.xlane.xlu0 %1120
            %v1122 = vsel %vm910, %v1114, 0.0
            %1123 = vadd.xlane.f32.xlu0 %v1122
            %v1124 = vpop.xlane.xlu0 %1123
            %v1125 = vsel %vm910, %v1116, 0.0
            %1126 = vadd.xlane.f32.xlu0 %v1125
            %v1127 = vpop.xlane.xlu0 %1126
            %v1128 = vsel %vm910, %v1118, 0.0
            %1129 = vadd.xlane.f32.xlu0 %v1128
            %v1130 = vpop.xlane.xlu0 %1129
            %v1131 = vrcp.pop %v1121
            %v1132 = vrcp.pop %v1124
            %v1133 = vrcp.pop %v1127
            %v1134 = vrcp.pop %v1130
            %v1135 = vmul.f32 %v1112, %v1131
            %v1136 = vmul.f32 %v1114, %v1132
            %v1137 = vmul.f32 %v1116, %v1133
            %v1138 = vmul.f32 %v1118, %v1134
            %v1139 = vpack.c.bf16 %v1135, %v1135
            %v1140 = vpack.c.bf16 %v1136, %v1136
            %v1141 = vpack.c.bf16 %v1137, %v1137
            %v1142 = vpack.c.bf16 %v1138, %v1138
            %v1144 = vsel %vm910, %v1139, 0
            %vm1146 = vcmask 1043456
            %v1148 = vsel %vm1146, %v906, 0
            %1150 = vmatprep.subr.bf16.mxu0 0
            %1151 = vmatpush1.bf16.msra.mxu0 0
            %1152 = vmatprep.subr.bf16.mxu0 0
            %1153 = vmatpush1.bf16.msra.mxu0 0
            %1154 = vmatprep.subr.bf16.mxu0 0
            %1155 = vmatpush1.bf16.msra.mxu0 0
            %1156 = vmatprep.subr.bf16.mxu0 0
            %1157 = vmatpush1.bf16.msra.mxu0 0
            %1158 = vmatprep.subr.bf16.mxu0 0
            %1159 = vmatpush1.bf16.msra.mxu0 0
            %1160 = vmatprep.subr.bf16.mxu0 0
            %1161 = vmatpush1.bf16.msra.mxu0 0
            %1162 = vmatprep.subr.bf16.mxu0 0
            %1163 = vmatpush1.bf16.msra.mxu0 0
            %1164 = vmatprep.subr.bf16.mxu0 0
            %1165 = vmatpush1.bf16.msra.mxu0 %v1148
            %1166 = vmatprep.subr.bf16.mxu0 0
            %1167 = vmatpush2.bf16.msra.mxu0 0
            %1168 = vmatprep.subr.bf16.mxu0 0
            %1169 = vmatpush2.bf16.msra.mxu0 0
            %1170 = vmatprep.subr.bf16.mxu0 0
            %1171 = vmatpush2.bf16.msra.mxu0 0
            %1172 = vmatprep.subr.bf16.mxu0 0
            %1173 = vmatpush2.bf16.msra.mxu0 0
            %1174 = vmatprep.subr.bf16.mxu0 0
            %1175 = vmatpush2.bf16.msra.mxu0 0
            %1176 = vmatprep.subr.bf16.mxu0 0
            %1177 = vmatpush2.bf16.msra.mxu0 0
            %1178 = vmatprep.subr.bf16.mxu0 0
            %1179 = vmatpush2.bf16.msra.mxu0 0
            %1180 = vmatprep.subr.bf16.mxu0 0
            %1181 = vmatpush2.bf16.msra.mxu0 0
            %1182 = vmatprep.mubr.bf16.mxu0 0
            %1183 = vmatmul.mubr.bf16.gmra.mxu0 %v1144
            %v1184 = vpop.f32.mrf.mxu0
            %v1185 = vadd.f32 0.0, %v1184
            %v1186 = vpop.f32.mrf.mxu0
            %v1187 = vpop.f32.mrf.mxu0
            %v1188 = vpop.f32.mrf.mxu0
            %1189 = vdwg.mxu0
            %v1191 = vsel %vm910, %v1140, 0
            %v1194 = vsel %vm1146, %v907, 0
            %1196 = vmatprep.subr.bf16.mxu0 0
            %1197 = vmatpush1.bf16.msra.mxu0 0
            %1198 = vmatprep.subr.bf16.mxu0 0
            %1199 = vmatpush1.bf16.msra.mxu0 0
            %1200 = vmatprep.subr.bf16.mxu0 0
            %1201 = vmatpush1.bf16.msra.mxu0 0
            %1202 = vmatprep.subr.bf16.mxu0 0
            %1203 = vmatpush1.bf16.msra.mxu0 0
            %1204 = vmatprep.subr.bf16.mxu0 0
            %1205 = vmatpush1.bf16.msra.mxu0 0
            %1206 = vmatprep.subr.bf16.mxu0 0
            %1207 = vmatpush1.bf16.msra.mxu0 0
            %1208 = vmatprep.subr.bf16.mxu0 0
            %1209 = vmatpush1.bf16.msra.mxu0 0
            %1210 = vmatprep.subr.bf16.mxu0 0
            %1211 = vmatpush1.bf16.msra.mxu0 %v1194
            %1212 = vmatprep.subr.bf16.mxu0 0
            %1213 = vmatpush2.bf16.msra.mxu0 0
            %1214 = vmatprep.subr.bf16.mxu0 0
            %1215 = vmatpush2.bf16.msra.mxu0 0
            %1216 = vmatprep.subr.bf16.mxu0 0
            %1217 = vmatpush2.bf16.msra.mxu0 0
            %1218 = vmatprep.subr.bf16.mxu0 0
            %1219 = vmatpush2.bf16.msra.mxu0 0
            %1220 = vmatprep.subr.bf16.mxu0 0
            %1221 = vmatpush2.bf16.msra.mxu0 0
            %1222 = vmatprep.subr.bf16.mxu0 0
            %1223 = vmatpush2.bf16.msra.mxu0 0
            %1224 = vmatprep.subr.bf16.mxu0 0
            %1225 = vmatpush2.bf16.msra.mxu0 0
            %1226 = vmatprep.subr.bf16.mxu0 0
            %1227 = vmatpush2.bf16.msra.mxu0 0
            %1228 = vmatprep.mubr.bf16.mxu0 0
            %1229 = vmatmul.mubr.bf16.gmra.mxu0 %v1191
            %v1230 = vpop.f32.mrf.mxu0
            %v1231 = vadd.f32 0.0, %v1230
            %v1232 = vpop.f32.mrf.mxu0
            %v1233 = vpop.f32.mrf.mxu0
            %v1234 = vpop.f32.mrf.mxu0
            %1235 = vdwg.mxu0
            %v1237 = vsel %vm910, %v1141, 0
            %v1240 = vsel %vm1146, %v908, 0
            %1242 = vmatprep.subr.bf16.mxu0 0
            %1243 = vmatpush1.bf16.msra.mxu0 0
            %1244 = vmatprep.subr.bf16.mxu0 0
            %1245 = vmatpush1.bf16.msra.mxu0 0
            %1246 = vmatprep.subr.bf16.mxu0 0
            %1247 = vmatpush1.bf16.msra.mxu0 0
            %1248 = vmatprep.subr.bf16.mxu0 0
            %1249 = vmatpush1.bf16.msra.mxu0 0
            %1250 = vmatprep.subr.bf16.mxu0 0
            %1251 = vmatpush1.bf16.msra.mxu0 0
            %1252 = vmatprep.subr.bf16.mxu0 0
            %1253 = vmatpush1.bf16.msra.mxu0 0
            %1254 = vmatprep.subr.bf16.mxu0 0
            %1255 = vmatpush1.bf16.msra.mxu0 0
            %1256 = vmatprep.subr.bf16.mxu0 0
            %1257 = vmatpush1.bf16.msra.mxu0 %v1240
            %1258 = vmatprep.subr.bf16.mxu0 0
            %1259 = vmatpush2.bf16.msra.mxu0 0
            %1260 = vmatprep.subr.bf16.mxu0 0
            %1261 = vmatpush2.bf16.msra.mxu0 0
            %1262 = vmatprep.subr.bf16.mxu0 0
            %1263 = vmatpush2.bf16.msra.mxu0 0
            %1264 = vmatprep.subr.bf16.mxu0 0
            %1265 = vmatpush2.bf16.msra.mxu0 0
            %1266 = vmatprep.subr.bf16.mxu0 0
            %1267 = vmatpush2.bf16.msra.mxu0 0
            %1268 = vmatprep.subr.bf16.mxu0 0
            %1269 = vmatpush2.bf16.msra.mxu0 0
            %1270 = vmatprep.subr.bf16.mxu0 0
            %1271 = vmatpush2.bf16.msra.mxu0 0
            %1272 = vmatprep.subr.bf16.mxu0 0
            %1273 = vmatpush2.bf16.msra.mxu0 0
            %1274 = vmatprep.mubr.bf16.mxu0 0
            %1275 = vmatmul.mubr.bf16.gmra.mxu0 %v1237
            %v1276 = vpop.f32.mrf.mxu0
            %v1277 = vadd.f32 0.0, %v1276
            %v1278 = vpop.f32.mrf.mxu0
            %v1279 = vpop.f32.mrf.mxu0
            %v1280 = vpop.f32.mrf.mxu0
            %1281 = vdwg.mxu0
            %v1283 = vsel %vm910, %v1142, 0
            %v1286 = vsel %vm1146, %v909, 0
            %1288 = vmatprep.subr.bf16.mxu0 0
            %1289 = vmatpush1.bf16.msra.mxu0 0
            %1290 = vmatprep.subr.bf16.mxu0 0
            %1291 = vmatpush1.bf16.msra.mxu0 0
            %1292 = vmatprep.subr.bf16.mxu0 0
            %1293 = vmatpush1.bf16.msra.mxu0 0
            %1294 = vmatprep.subr.bf16.mxu0 0
            %1295 = vmatpush1.bf16.msra.mxu0 0
            %1296 = vmatprep.subr.bf16.mxu0 0
            %1297 = vmatpush1.bf16.msra.mxu0 0
            %1298 = vmatprep.subr.bf16.mxu0 0
            %1299 = vmatpush1.bf16.msra.mxu0 0
            %1300 = vmatprep.subr.bf16.mxu0 0
            %1301 = vmatpush1.bf16.msra.mxu0 0
            %1302 = vmatprep.subr.bf16.mxu0 0
            %1303 = vmatpush1.bf16.msra.mxu0 %v1286
            %1304 = vmatprep.subr.bf16.mxu0 0
            %1305 = vmatpush2.bf16.msra.mxu0 0
            %1306 = vmatprep.subr.bf16.mxu0 0
            %1307 = vmatpush2.bf16.msra.mxu0 0
            %1308 = vmatprep.subr.bf16.mxu0 0
            %1309 = vmatpush2.bf16.msra.mxu0 0
            %1310 = vmatprep.subr.bf16.mxu0 0
            %1311 = vmatpush2.bf16.msra.mxu0 0
            %1312 = vmatprep.subr.bf16.mxu0 0
            %1313 = vmatpush2.bf16.msra.mxu0 0
            %1314 = vmatprep.subr.bf16.mxu0 0
            %1315 = vmatpush2.bf16.msra.mxu0 0
            %1316 = vmatprep.subr.bf16.mxu0 0
            %1317 = vmatpush2.bf16.msra.mxu0 0
            %1318 = vmatprep.subr.bf16.mxu0 0
            %1319 = vmatpush2.bf16.msra.mxu0 0
            %1320 = vmatprep.mubr.bf16.mxu0 0
            %1321 = vmatmul.mubr.bf16.gmra.mxu0 %v1283
            %v1322 = vpop.f32.mrf.mxu0
            %v1323 = vadd.f32 0.0, %v1322
            %v1324 = vpop.f32.mrf.mxu0
            %v1325 = vpop.f32.mrf.mxu0
            %v1326 = vpop.f32.mrf.mxu0
            %1327 = vdwg.mxu0
            %v1328 = vpack.c.bf16 %v1185, %v1185
            %v1329 = vpack.c.bf16 %v1231, %v1231
            %v1330 = vpack.c.bf16 %v1277, %v1277
            %v1331 = vpack.c.bf16 %v1323, %v1323
            %1332 = vst.msk [vmem:[%s893] sm:$0xf] %vm760, %v1328
            %1333 = vst.msk [vmem:[%s893 + $0x4] sm:$0xf] %vm760, %v1329
            %1334 = vst.msk [vmem:[%s893 + $0x8] sm:$0xf] %vm760, %v1330
            %1335 = vst.msk [vmem:[%s893 + $0xc] sm:$0xf] %vm760, %v1331
          $region122: #{tpu_custom_call.1} parent=116 // loop_footer
            %s890 = sadd.s32 1, %s886
          $region123: #{tpu_custom_call.1} parent=116 // loop_footer_branch
            %885 = sbr.rel target = $region119
          $region124: #{tpu_custom_call.1} parent=116 // loop_exit
            _
          %v1336 = vld [vmem:[#allocation2] sm:$0xf]
          %1337 = vst.msk [vmem:[#allocation5] sm:$0xf] %vm760, %v1336
          %v1338 = vld [vmem:[%s776] sm:$0xf]
          %1340 = vrot.lane.b32.xlu0 %v1338, 8
          %v1341 = vpop.permute.xlu0 %1340
          %vm1343 = vcmask 126016
          %1344 = vst.msk [vmem:[#allocation5] sm:$0xf] %vm1343, %v1341
          %v1345 = vld [vmem:[%s791] sm:$0xf]
          %1347 = vrot.lane.b32.xlu0 %v1345, 16
          %v1348 = vpop.permute.xlu0 %1347
          %vm1350 = vcmask 191616
          %1351 = vst.msk [vmem:[#allocation5] sm:$0xf] %vm1350, %v1348
          %v1352 = vld [vmem:[%s806] sm:$0xf]
          %1354 = vrot.lane.b32.xlu0 %v1352, 24
          %v1355 = vpop.permute.xlu0 %1354
          %vm1357 = vcmask 257216
          %1358 = vst.msk [vmem:[#allocation5] sm:$0xf] %vm1357, %v1355
          %v1359 = vld [vmem:[%s819] sm:$0xf]
          %1360 = vst.msk [vmem:[#allocation5 + $0x4] sm:$0xf] %vm760, %v1359
          %v1361 = vld [vmem:[%s837] sm:$0xf]
          %1363 = vrot.lane.b32.xlu0 %v1361, 8
          %v1364 = vpop.permute.xlu0 %1363
          %1366 = vst.msk [vmem:[#allocation5 + $0x4] sm:$0xf] %vm1343, %v1364
          %v1367 = vld [vmem:[%s852] sm:$0xf]
          %1369 = vrot.lane.b32.xlu0 %v1367, 16
          %v1370 = vpop.permute.xlu0 %1369
          %1372 = vst.msk [vmem:[#allocation5 + $0x4] sm:$0xf] %vm1350, %v1370
          %v1373 = vld [vmem:[%s867] sm:$0xf]
          %1375 = vrot.lane.b32.xlu0 %v1373, 24
          %v1376 = vpop.permute.xlu0 %1375
          %1378 = vst.msk [vmem:[#allocation5 + $0x4] sm:$0xf] %vm1357, %v1376
          %v1379 = vld [vmem:[#allocation5] sm:$0xf]
          %v1380 = vld [vmem:[#allocation5 + $0x4] sm:$0xf]
          %v1381 = vld [vmem:[%s5] sm:$0xf]
          %v1382 = vld [vmem:[%s5 + $0x4] sm:$0xf]
          %v1383 = vld [vmem:[%s5 + $0x8] sm:$0xf]
          %v1384 = vld [vmem:[%s5 + $0xc] sm:$0xf]
          %v1385 = vld [vmem:[%s6] sm:$0x1]
          %v1387 = vlaneseq
          %v1388 = vshrl.u32 %v1387, 7
          %v1389 = vsub.s32 0, %v1388
          %v1390 = vrot.slane %v1385, %v1389
          %v1394 = vunpack.c.l.b16 %v1379
          %v1395 = vunpack.c.l.b16 %v1380
          %v1396 = vpack.c.b16 %v1395, %v1394
          %v1401 = vunpack.c.l.b16 %v1381
          %v1402 = vunpack.c.l.b16 %v1382
          %v1403 = vunpack.c.l.b16 %v1383
          %v1404 = vunpack.c.l.b16 %v1384
          %v1405 = vpack.c.b16 %v1402, %v1401
          %v1406 = vpack.c.b16 %v1404, %v1403
          %v1410 = vsel %vm629, %v1396, 0
          %1412 = vmatprep.subr.bf16.mxu0 0
          %1413 = vmatpush1.bf16.msra.mxu0 0
          %1414 = vmatprep.subr.bf16.mxu0 0
          %1415 = vmatpush1.bf16.msra.mxu0 0
          %1416 = vmatprep.subr.bf16.mxu0 0
          %1417 = vmatpush1.bf16.msra.mxu0 0
          %1418 = vmatprep.subr.bf16.mxu0 0
          %1419 = vmatpush1.bf16.msra.mxu0 0
          %1420 = vmatprep.subr.bf16.mxu0 0
          %1421 = vmatpush1.bf16.msra.mxu0 0
          %1422 = vmatprep.subr.bf16.mxu0 0
          %1423 = vmatpush1.bf16.msra.mxu0 0
          %1424 = vmatprep.subr.bf16.mxu0 0
          %1425 = vmatpush1.bf16.msra.mxu0 %v1406
          %1426 = vmatprep.subr.bf16.mxu0 0
          %1427 = vmatpush1.bf16.msra.mxu0 %v1405
          %1428 = vmatprep.subr.bf16.mxu0 0
          %1429 = vmatpush2.bf16.msra.mxu0 0
          %1430 = vmatprep.subr.bf16.mxu0 0
          %1431 = vmatpush2.bf16.msra.mxu0 0
          %1432 = vmatprep.subr.bf16.mxu0 0
          %1433 = vmatpush2.bf16.msra.mxu0 0
          %1434 = vmatprep.subr.bf16.mxu0 0
          %1435 = vmatpush2.bf16.msra.mxu0 0
          %1436 = vmatprep.subr.bf16.mxu0 0
          %1437 = vmatpush2.bf16.msra.mxu0 0
          %1438 = vmatprep.subr.bf16.mxu0 0
          %1439 = vmatpush2.bf16.msra.mxu0 0
          %1440 = vmatprep.subr.bf16.mxu0 0
          %1441 = vmatpush2.bf16.msra.mxu0 0
          %1442 = vmatprep.subr.bf16.mxu0 0
          %1443 = vmatpush2.bf16.msra.mxu0 0
          %1444 = vmatprep.mubr.bf16.mxu0 0
          %1445 = vmatmul.mubr.bf16.gmra.mxu0 %v1410
          %v1446 = vpop.f32.mrf.mxu0
          %v1447 = vadd.f32 %v1390, %v1446
          %v1448 = vpop.f32.mrf.mxu0
          %v1449 = vpop.f32.mrf.mxu0
          %v1450 = vadd.f32 %v1390, %v1449
          %v1451 = vpop.f32.mrf.mxu0
          %1452 = vdwg.mxu0
          %v1453 = vadd.f32 %v625, %v1447
          %v1454 = vadd.f32 %v626, %v1450
          %1455 = vst.msk [vmem:[#allocation6] sm:$0xff] %vm629, %v1453
          %1456 = vst.msk [vmem:[#allocation6 + $0x8] sm:$0xff] %vm629, %v1454
          %v1457 = vld [vmem:[%s7] sm:$0x1]
          %v1458 = vld [vmem:[%s8] sm:$0x1]
          %v1459 = vsel %vm629, %v1453, 0.0
          %1460 = vadd.xlane.f32.xlu0 %v1459
          %v1461 = vpop.xlane.xlu0 %1460
          %v1462 = vsel %vm629, %v1454, 0.0
          %1463 = vadd.xlane.f32.xlu0 %v1462
          %v1464 = vpop.xlane.xlu0 %1463
          %v1465 = vmul.f32 %v1461, %v636
          %v1466 = vmul.f32 %v1464, %v636
          %v1467 = vsub.f32 %v1453, %v1465
          %v1468 = vsub.f32 %v1454, %v1466
          %v1469 = vmul.f32 %v1467, %v1467
          %v1470 = vmul.f32 %v1468, %v1468
          %v1471 = vsel %vm629, %v1469, 0.0
          %1472 = vadd.xlane.f32.xlu0 %v1471
          %v1473 = vpop.xlane.xlu0 %1472
          %v1474 = vsel %vm629, %v1470, 0.0
          %1475 = vadd.xlane.f32.xlu0 %v1474
          %v1476 = vpop.xlane.xlu0 %1475
          %v1477 = vmul.f32 %v1473, %v636
          %v1478 = vmul.f32 %v1476, %v636
          %v1479 = vadd.f32 %v1477, 1e-06
          %v1480 = vadd.f32 %v1478, 1e-06
          %v1481 = vrsqrt.pop %v1479
          %v1482 = vrsqrt.pop %v1480
          %v1483 = vmul.f32 %v1467, %v1481
          %v1484 = vmul.f32 %v1468, %v1482
          %v1486 = vlaneseq
          %v1487 = vshrl.u32 %v1486, 7
          %v1488 = vsub.s32 0, %v1487
          %v1489 = vrot.slane %v1457, %v1488
          %v1491 = vmul.f32 %v1483, %v1489
          %v1492 = vmul.f32 %v1484, %v1489
          %v1494 = vlaneseq
          %v1495 = vshrl.u32 %v1494, 7
          %v1496 = vsub.s32 0, %v1495
          %v1497 = vrot.slane %v1458, %v1496
          %v1499 = vadd.f32 %v1491, %v1497
          %v1500 = vadd.f32 %v1492, %v1497
          %v1501 = vpack.c.bf16 %v1500, %v1499
          %v1503 = vunpack.c.l.b16 %v1501
          %v1504 = vunpack.c.h.b16 %v1501
          %v1505 = vpack.c.b16 %v1503, %v1503
          %v1506 = vpack.c.b16 %v1504, %v1504
          %vm1509 = vcmask 257024
          %1510 = vst.msk [vmem:[#allocation7] sm:$0xf] %vm1509, %v1505
          %1511 = vst.msk [vmem:[#allocation7 + $0x4] sm:$0xf] %vm1509, %v1506
          %1512 = vst.msk [vmem:[#allocation8] sm:$0xff] %vm629, 0.0
          %1513 = vst.msk [vmem:[#allocation8 + $0x8] sm:$0xff] %vm629, 0.0
        $region117: #{tpu_custom_call.1} parent=108 // pred_fallthru
          _
        %v1514 = vld [vmem:[#allocation7] sm:$0xf]
        %v1515 = vld [vmem:[#allocation7 + $0x4] sm:$0xf]
        %v1516 = vld [vmem:[%s549] sm:$0xf]
        %v1517 = vld [vmem:[%s549 + $0x4] sm:$0xf]
        %v1518 = vld [vmem:[%s549 + $0x8] sm:$0xf]
        %v1519 = vld [vmem:[%s549 + $0xc] sm:$0xf]
        %v1520 = vld [vmem:[%s610] sm:$0x1]
        %v1522 = vlaneseq
        %v1523 = vshrl.u32 %v1522, 7
        %v1524 = vsub.s32 0, %v1523
        %v1525 = vrot.slane %v1520, %v1524
        %v1529 = vunpack.c.l.b16 %v1514
        %v1530 = vunpack.c.l.b16 %v1515
        %v1531 = vpack.c.b16 %v1530, %v1529
        %v1536 = vunpack.c.l.b16 %v1516
        %v1537 = vunpack.c.l.b16 %v1517
        %v1538 = vunpack.c.l.b16 %v1518
        %v1539 = vunpack.c.l.b16 %v1519
        %v1540 = vpack.c.b16 %v1537, %v1536
        %v1541 = vpack.c.b16 %v1539, %v1538
        %vm1544 = vcmask 261120
        %v1546 = vsel %vm1544, %v1531, 0
        %1548 = vmatprep.subr.bf16.mxu0 0
        %1549 = vmatpush1.bf16.msra.mxu0 0
        %1550 = vmatprep.subr.bf16.mxu0 0
        %1551 = vmatpush1.bf16.msra.mxu0 0
        %1552 = vmatprep.subr.bf16.mxu0 0
        %1553 = vmatpush1.bf16.msra.mxu0 0
        %1554 = vmatprep.subr.bf16.mxu0 0
        %1555 = vmatpush1.bf16.msra.mxu0 0
        %1556 = vmatprep.subr.bf16.mxu0 0
        %1557 = vmatpush1.bf16.msra.mxu0 0
        %1558 = vmatprep.subr.bf16.mxu0 0
        %1559 = vmatpush1.bf16.msra.mxu0 0
        %1560 = vmatprep.subr.bf16.mxu0 0
        %1561 = vmatpush1.bf16.msra.mxu0 %v1541
        %1562 = vmatprep.subr.bf16.mxu0 0
        %1563 = vmatpush1.bf16.msra.mxu0 %v1540
        %1564 = vmatprep.subr.bf16.mxu0 0
        %1565 = vmatpush2.bf16.msra.mxu0 0
        %1566 = vmatprep.subr.bf16.mxu0 0
        %1567 = vmatpush2.bf16.msra.mxu0 0
        %1568 = vmatprep.subr.bf16.mxu0 0
        %1569 = vmatpush2.bf16.msra.mxu0 0
        %1570 = vmatprep.subr.bf16.mxu0 0
        %1571 = vmatpush2.bf16.msra.mxu0 0
        %1572 = vmatprep.subr.bf16.mxu0 0
        %1573 = vmatpush2.bf16.msra.mxu0 0
        %1574 = vmatprep.subr.bf16.mxu0 0
        %1575 = vmatpush2.bf16.msra.mxu0 0
        %1576 = vmatprep.subr.bf16.mxu0 0
        %1577 = vmatpush2.bf16.msra.mxu0 0
        %1578 = vmatprep.subr.bf16.mxu0 0
        %1579 = vmatpush2.bf16.msra.mxu0 0
        %1580 = vmatprep.mubr.bf16.mxu0 0
        %1581 = vmatmul.mubr.bf16.gmra.mxu0 %v1546
        %v1582 = vpop.f32.mrf.mxu0
        %v1583 = vadd.f32 %v1525, %v1582
        %v1584 = vpop.f32.mrf.mxu0
        %v1585 = vpop.f32.mrf.mxu0
        %v1586 = vadd.f32 %v1525, %v1585
        %v1587 = vpop.f32.mrf.mxu0
        %1588 = vdwg.mxu0
        %v1589 = vmax.f32 %v1583, 0.0
        %v1590 = vmax.f32 %v1586, 0.0
        %v1591 = vld [vmem:[#allocation8] sm:$0xff]
        %v1592 = vld [vmem:[#allocation8 + $0x8] sm:$0xff]
        %v1593 = vpack.c.bf16 %v1590, %v1589
        %v1594 = vld [vmem:[%s615] sm:$0xf]
        %v1595 = vld [vmem:[%s615 + $0x4] sm:$0xf]
        %v1596 = vld [vmem:[%s615 + $0x8] sm:$0xf]
        %v1597 = vld [vmem:[%s615 + $0xc] sm:$0xf]
        %v1598 = vld [vmem:[%s615 + $0x10] sm:$0xf]
        %v1599 = vld [vmem:[%s615 + $0x14] sm:$0xf]
        %v1600 = vld [vmem:[%s615 + $0x18] sm:$0xf]
        %v1601 = vld [vmem:[%s615 + $0x1c] sm:$0xf]
        %v1602 = vld [vmem:[%s615 + $0x20] sm:$0xf]
        %v1603 = vld [vmem:[%s615 + $0x24] sm:$0xf]
        %v1604 = vld [vmem:[%s615 + $0x28] sm:$0xf]
        %v1605 = vld [vmem:[%s615 + $0x2c] sm:$0xf]
        %v1606 = vld [vmem:[%s615 + $0x30] sm:$0xf]
        %v1607 = vld [vmem:[%s615 + $0x34] sm:$0xf]
        %v1608 = vld [vmem:[%s615 + $0x38] sm:$0xf]
        %v1609 = vld [vmem:[%s615 + $0x3c] sm:$0xf]
        %v1626 = vunpack.c.l.b16 %v1594
        %v1627 = vunpack.c.l.b16 %v1595
        %v1628 = vunpack.c.l.b16 %v1596
        %v1629 = vunpack.c.l.b16 %v1597
        %v1630 = vunpack.c.l.b16 %v1598
        %v1631 = vunpack.c.l.b16 %v1599
        %v1632 = vunpack.c.l.b16 %v1600
        %v1633 = vunpack.c.l.b16 %v1601
        %v1634 = vunpack.c.l.b16 %v1602
        %v1635 = vunpack.c.l.b16 %v1603
        %v1636 = vunpack.c.l.b16 %v1604
        %v1637 = vunpack.c.l.b16 %v1605
        %v1638 = vunpack.c.l.b16 %v1606
        %v1639 = vunpack.c.l.b16 %v1607
        %v1640 = vunpack.c.l.b16 %v1608
        %v1641 = vunpack.c.l.b16 %v1609
        %v1642 = vpack.c.b16 %v1627, %v1626
        %v1643 = vpack.c.b16 %v1629, %v1628
        %v1644 = vpack.c.b16 %v1631, %v1630
        %v1645 = vpack.c.b16 %v1633, %v1632
        %v1646 = vpack.c.b16 %v1635, %v1634
        %v1647 = vpack.c.b16 %v1637, %v1636
        %v1648 = vpack.c.b16 %v1639, %v1638
        %v1649 = vpack.c.b16 %v1641, %v1640
        %1658 = vmatprep.subr.bf16.mxu0 0
        %1659 = vmatpush1.bf16.msra.mxu0 %v1649
        %1660 = vmatprep.subr.bf16.mxu0 0
        %1661 = vmatpush1.bf16.msra.mxu0 %v1648
        %1662 = vmatprep.subr.bf16.mxu0 0
        %1663 = vmatpush1.bf16.msra.mxu0 %v1647
        %1664 = vmatprep.subr.bf16.mxu0 0
        %1665 = vmatpush1.bf16.msra.mxu0 %v1646
        %1666 = vmatprep.subr.bf16.mxu0 0
        %1667 = vmatpush1.bf16.msra.mxu0 %v1645
        %1668 = vmatprep.subr.bf16.mxu0 0
        %1669 = vmatpush1.bf16.msra.mxu0 %v1644
        %1670 = vmatprep.subr.bf16.mxu0 0
        %1671 = vmatpush1.bf16.msra.mxu0 %v1643
        %1672 = vmatprep.subr.bf16.mxu0 0
        %1673 = vmatpush1.bf16.msra.mxu0 %v1642
        %1674 = vmatprep.subr.bf16.mxu0 0
        %1675 = vmatpush2.bf16.msra.mxu0 0
        %1676 = vmatprep.subr.bf16.mxu0 0
        %1677 = vmatpush2.bf16.msra.mxu0 0
        %1678 = vmatprep.subr.bf16.mxu0 0
        %1679 = vmatpush2.bf16.msra.mxu0 0
        %1680 = vmatprep.subr.bf16.mxu0 0
        %1681 = vmatpush2.bf16.msra.mxu0 0
        %1682 = vmatprep.subr.bf16.mxu0 0
        %1683 = vmatpush2.bf16.msra.mxu0 0
        %1684 = vmatprep.subr.bf16.mxu0 0
        %1685 = vmatpush2.bf16.msra.mxu0 0
        %1686 = vmatprep.subr.bf16.mxu0 0
        %1687 = vmatpush2.bf16.msra.mxu0 0
        %1688 = vmatprep.subr.bf16.mxu0 0
        %1689 = vmatpush2.bf16.msra.mxu0 0
        %1690 = vmatprep.mubr.bf16.mxu0 0
        %1691 = vmatmul.mubr.bf16.gmra.mxu0 %v1593
        %v1692 = vpop.f32.mrf.mxu0
        %v1693 = vadd.f32 0.0, %v1692
        %v1694 = vpop.f32.mrf.mxu0
        %v1695 = vpop.f32.mrf.mxu0
        %v1696 = vadd.f32 0.0, %v1695
        %v1697 = vpop.f32.mrf.mxu0
        %1698 = vdwg.mxu0
        %v1699 = vadd.f32 %v1591, %v1693
        %v1700 = vadd.f32 %v1592, %v1696
        %1701 = vst.msk [vmem:[#allocation8] sm:$0xff] %vm1544, %v1699
        %1702 = vst.msk [vmem:[#allocation8 + $0x8] sm:$0xff] %vm1544, %v1700
        %p1703 = scmp.eq.s32.totalorder %s34, 1
        // Predicated region
        $region125: #{tpu_custom_call.1} parent=108 // pred_check
          %p1704 = pneg %p1703
        $region126: #{tpu_custom_call.1} parent=108 // pred_check_branch
          %1706 = sbr.rel (%p1704) target = $region128
        $region127: #{tpu_custom_call.1} parent=108 // pred_region
          %v1707 = vld [vmem:[#allocation6] sm:$0xff]
          %v1708 = vld [vmem:[#allocation6 + $0x8] sm:$0xff]
          %v1709 = vld [vmem:[#allocation8] sm:$0xff]
          %v1710 = vld [vmem:[#allocation8 + $0x8] sm:$0xff]
          %v1711 = vadd.f32 %v1707, %v1709
          %v1712 = vadd.f32 %v1708, %v1710
          %v1713 = vld [vmem:[%s12] sm:$0x1]
          %v1715 = vlaneseq
          %v1716 = vshrl.u32 %v1715, 7
          %v1717 = vsub.s32 0, %v1716
          %v1718 = vrot.slane %v1713, %v1717
          %v1720 = vadd.f32 %v1711, %v1718
          %v1721 = vadd.f32 %v1712, %v1718
          %1722 = vst.msk [vmem:[#allocation10] sm:$0xff] %vm1544, %v1720
          %1723 = vst.msk [vmem:[#allocation10 + $0x8] sm:$0xff] %vm1544, %v1721
        $region128: #{tpu_custom_call.1} parent=108 // pred_fallthru
          _
        // Predicated region
        $region129: #{tpu_custom_call.1} parent=108 // pred_check
          %p1724 = pneg %p352
        $region130: #{tpu_custom_call.1} parent=108 // pred_check_branch
          %1726 = sbr.rel (%p1724) target = $region132
        $region131: #{tpu_custom_call.1} parent=108 // pred_region
          %s1727 = smul.u32 2, %s33
          %s1729 = ssub.s32 256, 256
          %1730 = vsyncadd [#allocation11], %s1729
          %s1731 = smul.addr %s1727, 128
          %s1732 = scalar_lea.hbm %s13, %s1731
          %s1733 = sshll.u32 [#allocation10], 4
          %s1734 = int_to_ptr.vmem [resolvable:$true] %s1733
          %1739 = dma.vmem_to_hbm [thread:$0]  %s1734, 256, %s1732, [#allocation11], 128, 128, 8
        $region132: #{tpu_custom_call.1} parent=108 // pred_fallthru
          _
        // Predicated region
        $region133: #{tpu_custom_call.1} parent=108 // pred_check
          %p1740 = pneg %p378
        $region134: #{tpu_custom_call.1} parent=108 // pred_check_branch
          %1742 = sbr.rel (%p1740) target = $region136
        $region135: #{tpu_custom_call.1} parent=108 // pred_region
          %s1743 = smul.u32 2, %s33
          %s1745 = ssub.s32 256, 256
          %1746 = vsyncadd [#allocation13], %s1745
          %s1747 = smul.addr %s1743, 128
          %s1748 = scalar_lea.hbm %s14, %s1747
          %s1749 = sshll.u32 [#allocation12], 4
          %s1750 = int_to_ptr.vmem [resolvable:$true] %s1749
          %1755 = dma.vmem_to_hbm [thread:$0]  %s1750, 256, %s1748, [#allocation13], 128, 128, 8
        $region136: #{tpu_custom_call.1} parent=108 // pred_fallthru
          _
        // Predicated region
        $region137: #{tpu_custom_call.1} parent=108 // pred_check
          %p1756 = pneg %p404
        $region138: #{tpu_custom_call.1} parent=108 // pred_check_branch
          %1758 = sbr.rel (%p1756) target = $region140
        $region139: #{tpu_custom_call.1} parent=108 // pred_region
          %s1759 = smul.u32 2, %s33
          %s1761 = ssub.s32 256, 256
          %1762 = vsyncadd [#allocation13], %s1761
          %s1763 = smul.addr %s1759, 128
          %s1764 = scalar_lea.hbm %s15, %s1763
          %s1765 = sshll.u32 [#allocation14], 4
          %s1766 = int_to_ptr.vmem [resolvable:$true] %s1765
          %1771 = dma.vmem_to_hbm [thread:$0]  %s1766, 256, %s1764, [#allocation13], 128, 128, 8
        $region140: #{tpu_custom_call.1} parent=108 // pred_fallthru
          _
        // Predicated region
        $region141: #{tpu_custom_call.1} parent=108 // pred_check
          %p1772 = pneg %p352
        $region142: #{tpu_custom_call.1} parent=108 // pred_check_branch
          %1774 = sbr.rel (%p1772) target = $region144
        $region143: #{tpu_custom_call.1} parent=108 // pred_region
          %1775 = dma.done [#allocation11], 256
        $region144: #{tpu_custom_call.1} parent=108 // pred_fallthru
          _
        // Predicated region
        $region145: #{tpu_custom_call.1} parent=108 // pred_check
          %p1776 = pneg %p378
        $region146: #{tpu_custom_call.1} parent=108 // pred_check_branch
          %1778 = sbr.rel (%p1776) target = $region148
        $region147: #{tpu_custom_call.1} parent=108 // pred_region
          %1779 = dma.done [#allocation13], 256
        $region148: #{tpu_custom_call.1} parent=108 // pred_fallthru
          _
        // Predicated region
        $region149: #{tpu_custom_call.1} parent=108 // pred_check
          %p1780 = pneg %p404
        $region150: #{tpu_custom_call.1} parent=108 // pred_check_branch
          %1782 = sbr.rel (%p1780) target = $region152
        $region151: #{tpu_custom_call.1} parent=108 // pred_region
          %1783 = dma.done [#allocation13], 256
        $region152: #{tpu_custom_call.1} parent=108 // pred_fallthru
          _
      $region109: #{tpu_custom_call.1} parent=5 // pred_fallthru
        _
      %p1784 = scmp.le.s32.totalorder 2, %s24
      // Predicated region
      $region153: #{tpu_custom_call.1} parent=5 // pred_check
        %p1785 = pneg %p1784
      $region154: #{tpu_custom_call.1} parent=5 // pred_check_branch
        %1787 = sbr.rel (%p1785) target = $region156
      $region155: #{tpu_custom_call.1} parent=5 // pred_region
        %s1788 = ssub.s32 %s24, 2
      $region156: #{tpu_custom_call.1} parent=5 // pred_fallthru
        _
    $region6: #{tpu_custom_call.1} parent=1 // loop_footer
      %s28 = sadd.s32 1, %s24
    $region7: #{tpu_custom_call.1} parent=1 // loop_footer_branch
      %23 = sbr.rel target = $region3
    $region8: #{tpu_custom_call.1} parent=1 // loop_exit
      _
    %1789 = vsyncpa [#allocation11], 1
    %s1790 = scalar_lea.sflag [#allocation11], 1
    %1791 = vsyncpa %s1790, 1
    %1792 = vsyncpa [#allocation13], 1

</llo_original>
